<compile_context>
chip_gen: v7x
topology: tpu7x:2x2x1
jax: 0.10.0
libtpu: 0.0.40
codegen_flags: <defaults>
</compile_context>

<pallas_src>
import functools

import jax
import jax.numpy as jnp
from jax.experimental import pallas as pl
from jax.experimental.pallas import tpu as pltpu


def _make_net_kernel(layers):
    """Builds the Pallas kernel body for a given `layers` spec (static).

    Kernel works in transposed layout: activations are [features, tile_b]
    (batch on lanes), weights are in torch layout [out, in], biases [out, 1].
    """
    n_hidden = len(layers) - 2

    def kernel(*refs):
        # refs = (x_ref, *param_refs, out_ref)
        x_ref = refs[0]
        out_ref = refs[-1]
        p = refs[1:-1]

        x = x_ref[...]                      # [d_in, tile_b]
        tile_b = x.shape[-1]
        idx = 0
        d_cur = layers[0]
        for i in range(n_hidden):
            d_hid = layers[i + 1]
            w0 = p[idx][...]                # [d_hid, d_cur]
            b0 = p[idx + 1][...]            # [d_hid, 1]
            w1 = p[idx + 2][...]            # [d_hid, d_hid]
            b1 = p[idx + 3][...]            # [d_hid, 1]
            idx += 4

            h = jnp.sin(jnp.dot(w0, x, preferred_element_type=jnp.float32) + b0)
            h = jnp.sin(jnp.dot(w1, h, preferred_element_type=jnp.float32) + b1)

            # Residual x @ eye(d_cur, d_hid) without a matmul:
            #   pad with zeros (d_cur < d_hid), identity (==), truncate (>).
            if d_cur == d_hid:
                r = x
            elif d_cur < d_hid:
                r = jnp.concatenate(
                    [x, jnp.zeros((d_hid - d_cur, tile_b), dtype=x.dtype)], axis=0)
            else:
                r = x[:d_hid, :]
            x = h + r
            d_cur = d_hid

        w_last = p[idx][...]                # [d_out, d_hid]
        b_last = p[idx + 1][...]            # [d_out, 1]
        out = jnp.dot(w_last, x, preferred_element_type=jnp.float32) + b_last
        out_ref[...] = out.astype(out_ref.dtype)

    return kernel


def init_params(key, layers, dtype=jnp.float32):
    """Init matching torch.nn.Linear defaults (uniform +-1/sqrt(fan_in)).

    Returns a flat list of arrays in kernel argument order (torch layout,
    biases as column vectors so they broadcast over the lane/batch axis):
      [W0_i, b0_i, W1_i, b1_i]*n_hidden + [W_last, b_last]
      with W shaped [out, in] and b shaped [out, 1].
    """
    n_hidden = len(layers) - 2
    params = []

    def linear(k, fan_in, fan_out):
        kw, kb = jax.random.split(k)
        bound = 1.0 / jnp.sqrt(jnp.asarray(fan_in, dtype))
        w = jax.random.uniform(kw, (fan_out, fan_in), dtype, -bound, bound)
        b = jax.random.uniform(kb, (fan_out, 1), dtype, -bound, bound)
        return w, b

    keys = jax.random.split(key, 2 * n_hidden + 1)
    k = 0
    for i in range(n_hidden):
        d_in, d_hid = layers[i], layers[i + 1]
        w0, b0 = linear(keys[k], d_in, d_hid); k += 1
        w1, b1 = linear(keys[k], d_hid, d_hid); k += 1
        params += [w0, b0, w1, b1]
    w_last, b_last = linear(keys[k], layers[-2], layers[-1])
    params += [w_last, b_last]
    return params


def _cost_estimate(layers, n):
    """Advisory FLOP / transcendental / byte counts for the whole forward."""
    n_hidden = len(layers) - 2
    flops = 0
    trans = 0
    d_cur = layers[0]
    for i in range(n_hidden):
        d_hid = layers[i + 1]
        flops += 2 * d_hid * d_cur * n + 2 * d_hid * d_hid * n
        trans += 2 * d_hid * n          # two sin() layers per block
        d_cur = d_hid
    flops += 2 * layers[-1] * d_cur * n
    n_params = 0
    d_cur = layers[0]
    for i in range(n_hidden):
        d_hid = layers[i + 1]
        n_params += d_hid * d_cur + d_hid + d_hid * d_hid + d_hid
        d_cur = d_hid
    n_params += layers[-1] * d_cur + layers[-1]
    bytes_accessed = 4 * (n * layers[0] + n * layers[-1] + n_params)
    return pl.CostEstimate(flops=flops, transcendentals=trans,
                           bytes_accessed=bytes_accessed)


@functools.partial(jax.jit, static_argnames=("layers", "tile_b"))
def net_forward(x, params, layers, tile_b=128):
    """Runs the full Net forward as a single Pallas kernel.

    Batch is placed on the lane (last) axis inside the kernel: the kernel sees
    x as [d_in, n] tiled into [d_in, tile_b] blocks and writes a lane-dense
    [d_out, n] slab, transposed back once here.
    """
    n, d_in = x.shape
    assert d_in == layers[0]
    assert n % tile_b == 0, "batch must be a multiple of tile_b"
    d_out = layers[-1]

    kernel = _make_net_kernel(layers)

    x_t = x.T                                   # [d_in, n] : batch -> lanes

    x_spec = pl.BlockSpec((d_in, tile_b), lambda i: (0, i))
    param_specs = [pl.BlockSpec(p.shape, lambda i: (0, 0)) for p in params]
    out_spec = pl.BlockSpec((d_out, tile_b), lambda i: (0, i))

    out_t = pl.pallas_call(
        kernel,
        out_shape=jax.ShapeDtypeStruct((d_out, n), x.dtype),
        grid_spec=pltpu.PrefetchScalarGridSpec(
            num_scalar_prefetch=0,
            grid=(n // tile_b,),
            in_specs=[x_spec] + param_specs,
            out_specs=out_spec,
        ),
        compiler_params=pltpu.CompilerParams(
            dimension_semantics=("parallel",),
        ),
        cost_estimate=_cost_estimate(layers, n),
    )(x_t, *params)

    return out_t.T                              # back to [n, d_out]


def net_forward_ref(x, params, layers):
    """Pure-JAX reference (mirrors the PyTorch forward, including eye residual)."""
    n_hidden = len(layers) - 2
    idx = 0
    d_cur = layers[0]
    for i in range(n_hidden):
        w0, b0, w1, b1 = params[idx:idx + 4]
        idx += 4
        d_hid = layers[i + 1]
        h = jnp.sin(x @ w0.T + b0.T)
        h = jnp.sin(h @ w1.T + b1.T)
        eye = jnp.eye(d_cur, d_hid, dtype=x.dtype)
        x = h + x @ eye
        d_cur = d_hid
    w_last, b_last = params[idx], params[idx + 1]
    return x @ w_last.T + b_last.T


if __name__ == "__main__":
    # Small parametric-PDE-style net: 2 inputs -> two hidden blocks of 32 -> 1 output.
    layers = (2, 32, 32, 1)
    batch = 256                 # batch on lanes; 2 grid steps of 128 lanes each
    tile_b = 128

    key = jax.random.PRNGKey(0)
    k_x, k_p = jax.random.split(key)
    x = jax.random.normal(k_x, (batch, layers[0]), dtype=jnp.float32)
    params = init_params(k_p, layers, dtype=jnp.float32)

    out = net_forward(x, params, layers, tile_b=tile_b)
    out = jax.block_until_ready(out)

    ref = net_forward_ref(x, params, layers)
    assert out.shape == (batch, layers[-1])
    assert jnp.allclose(out, ref, atol=1e-4, rtol=1e-4), "mismatch vs JAX reference"

    print("KERNEL_OK")
</pallas_src>

<mosaic_0001>
module attributes {stable_mosaic.version = 11 : i64} {
  func.func @kernel(%arg0: i32, %arg1: memref<2x128xf32, #tpu.memory_space<vmem>>, %arg2: memref<32x2xf32, #tpu.memory_space<vmem>>, %arg3: memref<32x1xf32, #tpu.memory_space<vmem>>, %arg4: memref<32x32xf32, #tpu.memory_space<vmem>>, %arg5: memref<32x1xf32, #tpu.memory_space<vmem>>, %arg6: memref<32x32xf32, #tpu.memory_space<vmem>>, %arg7: memref<32x1xf32, #tpu.memory_space<vmem>>, %arg8: memref<32x32xf32, #tpu.memory_space<vmem>>, %arg9: memref<32x1xf32, #tpu.memory_space<vmem>>, %arg10: memref<1x32xf32, #tpu.memory_space<vmem>>, %arg11: memref<1x1xf32, #tpu.memory_space<vmem>>, %arg12: memref<1x128xf32, #tpu.memory_space<vmem>>) attributes {dimension_semantics = [#tpu.dimension_semantics<parallel>], iteration_bounds = array<i64: 2>, scalar_prefetch = 0 : i64, scratch_operands = 0 : i64, tpu.core_type = #tpu.core_type<tc>, window_params = [{transform_indices = @transform_0, window_bounds = array<i64: 2, 128>}, {pipeline_mode = #tpu.pipeline_mode<synchronous>, transform_indices = @transform_1, window_bounds = array<i64: 32, 2>}, {pipeline_mode = #tpu.pipeline_mode<synchronous>, transform_indices = @transform_2, window_bounds = array<i64: 32, 1>}, {pipeline_mode = #tpu.pipeline_mode<synchronous>, transform_indices = @transform_3, window_bounds = array<i64: 32, 32>}, {pipeline_mode = #tpu.pipeline_mode<synchronous>, transform_indices = @transform_4, window_bounds = array<i64: 32, 1>}, {pipeline_mode = #tpu.pipeline_mode<synchronous>, transform_indices = @transform_5, window_bounds = array<i64: 32, 32>}, {pipeline_mode = #tpu.pipeline_mode<synchronous>, transform_indices = @transform_6, window_bounds = array<i64: 32, 1>}, {pipeline_mode = #tpu.pipeline_mode<synchronous>, transform_indices = @transform_7, window_bounds = array<i64: 32, 32>}, {pipeline_mode = #tpu.pipeline_mode<synchronous>, transform_indices = @transform_8, window_bounds = array<i64: 32, 1>}, {pipeline_mode = #tpu.pipeline_mode<synchronous>, transform_indices = @transform_9, window_bounds = array<i64: 1, 32>}, {pipeline_mode = #tpu.pipeline_mode<synchronous>, transform_indices = @transform_10, window_bounds = array<i64: 1, 1>}, {transform_indices = @transform_11, window_bounds = array<i64: 1, 128>}]} {
    %c0 = arith.constant 0 : index
    %c0_0 = arith.constant 0 : index
    %0 = vector.load %arg1[%c0, %c0_0] : memref<2x128xf32, #tpu.memory_space<vmem>>, vector<2x128xf32>
    %c0_1 = arith.constant 0 : index
    %c0_2 = arith.constant 0 : index
    %1 = vector.load %arg2[%c0_1, %c0_2] : memref<32x2xf32, #tpu.memory_space<vmem>>, vector<32x2xf32>
    %c0_3 = arith.constant 0 : index
    %c0_4 = arith.constant 0 : index
    %2 = vector.load %arg3[%c0_3, %c0_4] : memref<32x1xf32, #tpu.memory_space<vmem>>, vector<32x1xf32>
    %c0_5 = arith.constant 0 : index
    %c0_6 = arith.constant 0 : index
    %3 = vector.load %arg4[%c0_5, %c0_6] : memref<32x32xf32, #tpu.memory_space<vmem>>, vector<32x32xf32>
    %c0_7 = arith.constant 0 : index
    %c0_8 = arith.constant 0 : index
    %4 = vector.load %arg5[%c0_7, %c0_8] : memref<32x1xf32, #tpu.memory_space<vmem>>, vector<32x1xf32>
    %cst = arith.constant dense<0.000000e+00> : vector<32x128xf32>
    %5 = tpu.matmul %1, %0, %cst {dimension_numbers = #tpu.dot_dimension_numbers<[1], [0], [0], [1], [0, 0, 1, 1], [], []>} : vector<32x2xf32>, vector<2x128xf32>, vector<32x128xf32> -> vector<32x128xf32>
    %6 = vector.broadcast %2 : vector<32x1xf32> to vector<32x128xf32>
    %7 = arith.addf %5, %6 : vector<32x128xf32>
    %8 = math.sin %7 : vector<32x128xf32>
    %cst_9 = arith.constant dense<0.000000e+00> : vector<32x128xf32>
    %9 = tpu.matmul %3, %8, %cst_9 {dimension_numbers = #tpu.dot_dimension_numbers<[1], [0], [0], [1], [0, 0, 1, 1], [], []>} : vector<32x32xf32>, vector<32x128xf32>, vector<32x128xf32> -> vector<32x128xf32>
    %10 = vector.broadcast %4 : vector<32x1xf32> to vector<32x128xf32>
    %11 = arith.addf %9, %10 : vector<32x128xf32>
    %12 = math.sin %11 : vector<32x128xf32>
    %cst_10 = arith.constant 0.000000e+00 : f32
    %13 = vector.broadcast %cst_10 : f32 to vector<30x128xf32>
    %14 = tpu.concatenate %0, %13 in 0 : vector<2x128xf32>, vector<30x128xf32> -> vector<32x128xf32>
    %15 = arith.addf %12, %14 : vector<32x128xf32>
    %c0_11 = arith.constant 0 : index
    %c0_12 = arith.constant 0 : index
    %16 = vector.load %arg6[%c0_11, %c0_12] : memref<32x32xf32, #tpu.memory_space<vmem>>, vector<32x32xf32>
    %c0_13 = arith.constant 0 : index
    %c0_14 = arith.constant 0 : index
    %17 = vector.load %arg7[%c0_13, %c0_14] : memref<32x1xf32, #tpu.memory_space<vmem>>, vector<32x1xf32>
    %c0_15 = arith.constant 0 : index
    %c0_16 = arith.constant 0 : index
    %18 = vector.load %arg8[%c0_15, %c0_16] : memref<32x32xf32, #tpu.memory_space<vmem>>, vector<32x32xf32>
    %c0_17 = arith.constant 0 : index
    %c0_18 = arith.constant 0 : index
    %19 = vector.load %arg9[%c0_17, %c0_18] : memref<32x1xf32, #tpu.memory_space<vmem>>, vector<32x1xf32>
    %cst_19 = arith.constant dense<0.000000e+00> : vector<32x128xf32>
    %20 = tpu.matmul %16, %15, %cst_19 {dimension_numbers = #tpu.dot_dimension_numbers<[1], [0], [0], [1], [0, 0, 1, 1], [], []>} : vector<32x32xf32>, vector<32x128xf32>, vector<32x128xf32> -> vector<32x128xf32>
    %21 = vector.broadcast %17 : vector<32x1xf32> to vector<32x128xf32>
    %22 = arith.addf %20, %21 : vector<32x128xf32>
    %23 = math.sin %22 : vector<32x128xf32>
    %cst_20 = arith.constant dense<0.000000e+00> : vector<32x128xf32>
    %24 = tpu.matmul %18, %23, %cst_20 {dimension_numbers = #tpu.dot_dimension_numbers<[1], [0], [0], [1], [0, 0, 1, 1], [], []>} : vector<32x32xf32>, vector<32x128xf32>, vector<32x128xf32> -> vector<32x128xf32>
    %25 = vector.broadcast %19 : vector<32x1xf32> to vector<32x128xf32>
    %26 = arith.addf %24, %25 : vector<32x128xf32>
    %27 = math.sin %26 : vector<32x128xf32>
    %28 = arith.addf %27, %15 : vector<32x128xf32>
    %c0_21 = arith.constant 0 : index
    %c0_22 = arith.constant 0 : index
    %29 = vector.load %arg10[%c0_21, %c0_22] : memref<1x32xf32, #tpu.memory_space<vmem>>, vector<1x32xf32>
    %c0_23 = arith.constant 0 : index
    %c0_24 = arith.constant 0 : index
    %30 = vector.load %arg11[%c0_23, %c0_24] : memref<1x1xf32, #tpu.memory_space<vmem>>, vector<1x1xf32>
    %cst_25 = arith.constant dense<0.000000e+00> : vector<1x128xf32>
    %31 = tpu.matmul %29, %28, %cst_25 {dimension_numbers = #tpu.dot_dimension_numbers<[1], [0], [0], [1], [0, 0, 1, 1], [], []>} : vector<1x32xf32>, vector<32x128xf32>, vector<1x128xf32> -> vector<1x128xf32>
    %32 = vector.broadcast %30 : vector<1x1xf32> to vector<1x128xf32>
    %33 = arith.addf %31, %32 : vector<1x128xf32>
    %c0_26 = arith.constant 0 : index
    %c0_27 = arith.constant 0 : index
    %34 = vector.load %arg12[%c0_26, %c0_27] : memref<1x128xf32, #tpu.memory_space<vmem>>, vector<1x128xf32>
    tpu.vector_store %arg12[%c0_26, %c0_27], %33 {strides = array<i32>} : memref<1x128xf32, #tpu.memory_space<vmem>>, vector<1x128xf32>,
    return
  }
  func.func @transform_0(%arg0: i32) -> (i32, i32) {
    %c0_i32 = arith.constant 0 : i32
    %c0_i32_0 = arith.constant 0 : i32
    return %c0_i32, %arg0 : i32, i32
  }
  func.func @transform_1(%arg0: i32) -> (i32, i32) {
    %c0_i32 = arith.constant 0 : i32
    %c0_i32_0 = arith.constant 0 : i32
    %c0_i32_1 = arith.constant 0 : i32
    return %c0_i32, %c0_i32_0 : i32, i32
  }
  func.func @transform_2(%arg0: i32) -> (i32, i32) {
    %c0_i32 = arith.constant 0 : i32
    %c0_i32_0 = arith.constant 0 : i32
    %c0_i32_1 = arith.constant 0 : i32
    return %c0_i32, %c0_i32_0 : i32, i32
  }
  func.func @transform_3(%arg0: i32) -> (i32, i32) {
    %c0_i32 = arith.constant 0 : i32
    %c0_i32_0 = arith.constant 0 : i32
    %c0_i32_1 = arith.constant 0 : i32
    return %c0_i32, %c0_i32_0 : i32, i32
  }
  func.func @transform_4(%arg0: i32) -> (i32, i32) {
    %c0_i32 = arith.constant 0 : i32
    %c0_i32_0 = arith.constant 0 : i32
    %c0_i32_1 = arith.constant 0 : i32
    return %c0_i32, %c0_i32_0 : i32, i32
  }
  func.func @transform_5(%arg0: i32) -> (i32, i32) {
    %c0_i32 = arith.constant 0 : i32
    %c0_i32_0 = arith.constant 0 : i32
    %c0_i32_1 = arith.constant 0 : i32
    return %c0_i32, %c0_i32_0 : i32, i32
  }
  func.func @transform_6(%arg0: i32) -> (i32, i32) {
    %c0_i32 = arith.constant 0 : i32
    %c0_i32_0 = arith.constant 0 : i32
    %c0_i32_1 = arith.constant 0 : i32
    return %c0_i32, %c0_i32_0 : i32, i32
  }
  func.func @transform_7(%arg0: i32) -> (i32, i32) {
    %c0_i32 = arith.constant 0 : i32
    %c0_i32_0 = arith.constant 0 : i32
    %c0_i32_1 = arith.constant 0 : i32
    return %c0_i32, %c0_i32_0 : i32, i32
  }
  func.func @transform_8(%arg0: i32) -> (i32, i32) {
    %c0_i32 = arith.constant 0 : i32
    %c0_i32_0 = arith.constant 0 : i32
    %c0_i32_1 = arith.constant 0 : i32
    return %c0_i32, %c0_i32_0 : i32, i32
  }
  func.func @transform_9(%arg0: i32) -> (i32, i32) {
    %c0_i32 = arith.constant 0 : i32
    %c0_i32_0 = arith.constant 0 : i32
    %c0_i32_1 = arith.constant 0 : i32
    return %c0_i32, %c0_i32_0 : i32, i32
  }
  func.func @transform_10(%arg0: i32) -> (i32, i32) {
    %c0_i32 = arith.constant 0 : i32
    %c0_i32_0 = arith.constant 0 : i32
    %c0_i32_1 = arith.constant 0 : i32
    return %c0_i32, %c0_i32_0 : i32, i32
  }
  func.func @transform_11(%arg0: i32) -> (i32, i32) {
    %c0_i32 = arith.constant 0 : i32
    %c0_i32_0 = arith.constant 0 : i32
    return %c0_i32, %arg0 : i32, i32
  }
}

</mosaic_0001>

<llo_original>
// kernel: net_forward.1
$region0: #{net_forward.1}
  #allocation0 [shape = 'u32[]', space=smem, size = 0x4, offset = 0x4, fixed_abs, tag = 'smem constant byte address 0x4 - core index']
  #allocation1 [shape = 'u32[144,128]{1,0:T(1,128)}', space=vmem, size = 0x12000, scoped, tag = 'internal scratch']
  #allocation2 [shape = 'f32[1,1]{1,0:T(1,128)S(1)}', space=vmem, size = 0x200, scoped, tag = 'scoped memory for net_forward.1']
  %s0 = inlined_call_operand.vmem [shape: f32[2,256], index: 0, kind: input, shape index: {}]
  %s1 = inlined_call_operand.vmem [shape: f32[32,2], index: 1, kind: input, shape index: {}]
  %s2 = inlined_call_operand.vmem [shape: f32[32,1], index: 2, kind: input, shape index: {}]
  %s3 = inlined_call_operand.vmem [shape: f32[32,32], index: 3, kind: input, shape index: {}]
  %s4 = inlined_call_operand.vmem [shape: f32[32,1], index: 4, kind: input, shape index: {}]
  %s5 = inlined_call_operand.vmem [shape: f32[32,32], index: 5, kind: input, shape index: {}]
  %s6 = inlined_call_operand.vmem [shape: f32[32,1], index: 6, kind: input, shape index: {}]
  %s7 = inlined_call_operand.vmem [shape: f32[32,32], index: 7, kind: input, shape index: {}]
  %s8 = inlined_call_operand.vmem [shape: f32[32,1], index: 8, kind: input, shape index: {}]
  %s9 = inlined_call_operand.vmem [shape: f32[1,32], index: 9, kind: input, shape index: {}]
  %s10 = inlined_call_operand.<no memory space> [shape: f32[1,1], index: 10, kind: input, shape index: {}]
  %s11 = inlined_call_operand.hbm [shape: f32[1,256], index: 11, kind: output, shape index: {}]
  %s12 = sld [smem:[#allocation0]]
  $region77: #{net_forward.1} parent=0
    _
  %s14 = ssub.s32 1, %s12
  %s15 = scalar_select 0, %s14, %s12
  %v16 = vstv %s10
  %17 = vst [vmem:[#allocation2] sm:$0x1] %v16
  $region1: #{net_forward.1} parent=0
    #allocation3 [shape = 'u8[1024]{0}', space=vmem, size = 0x400, scoped, tag = 'output window, operand 0']
    #allocation4 [shape = 's32[2]{0}', space=sflag, size = 0x8, scoped, tag = 'scoped memory for net_forward.1']
    %18 = vsyncpa [#allocation4], 0
    %s19 = scalar_lea.sflag [#allocation4], 1
    %20 = vsyncpa %s19, 0
    loop: start=0, step=1, limit=4
    $region2: #{net_forward.1} parent=1 // loop_pre_header
      _
    $region3: #{net_forward.1} parent=1 // loop_header
      %s22 = sphi 0, %s26
      %p23 = scmp.ge.s32.totalorder %s22, 4
      %s32 = sphi 0, %s34
      %s35 = sphi 0, %s32
      %s36 = sphi 0, %s35
      %s52 = sphi 0, %s36
      %s56 = sphi 0, %s56
      %s58 = sphi 0, %s56
      %s59 = sphi 0, %s58
      %s73 = sphi 0, %s59
      %s77 = sphi 0, %s77
      %s79 = sphi 0, %s77
      %s80 = sphi 0, %s79
      %s94 = sphi 0, %s80
      %s98 = sphi 0, %s98
      %s100 = sphi 0, %s98
      %s101 = sphi 0, %s100
      %s115 = sphi 0, %s101
      %s119 = sphi 0, %s119
      %s121 = sphi 0, %s119
      %s122 = sphi 0, %s121
      %s136 = sphi 0, %s122
      %s140 = sphi 0, %s140
      %s142 = sphi 0, %s140
      %s143 = sphi 0, %s142
      %s157 = sphi 0, %s143
      %s161 = sphi 0, %s161
      %s163 = sphi 0, %s161
      %s164 = sphi 0, %s163
      %s178 = sphi 0, %s164
      %s182 = sphi 0, %s182
      %s184 = sphi 0, %s182
      %s185 = sphi 0, %s184
      %s199 = sphi 0, %s185
      %s203 = sphi 0, %s203
      %s205 = sphi 0, %s203
      %s206 = sphi 0, %s205
      %s220 = sphi 0, %s206
      %s224 = sphi 0, %s224
      %s226 = sphi 0, %s224
      %s227 = sphi 0, %s226
      %s241 = sphi 0, %s227
      %s245 = sphi 0, %s245
      %s247 = sphi 0, %s245
      %s248 = sphi 0, %s247
      %s262 = sphi 0, %s248
      %s268 = sphi 0, %s270
      %s271 = sphi 0, %s268
      %s272 = sphi 0, %s271
      %s288 = sphi 0, %s272
    $region4: #{net_forward.1} parent=1 // loop_header_branch
      %25 = sbr.rel (%p23) target = $region8
    $region5: #{net_forward.1} parent=1 // loop_body
      %s27 = ssub.s32 %s22, 1
      %s28 = ssub.s32 %s22, 2
      %s29 = sadd.s32 %s22, 1
      %s30 = ssub.s32 %s22, %s29
      %p31 = scmp.eq.s32.totalorder %s30, 0
      %s33 = sadd.s32 %s32, 1
      %s34 = scalar_select %p31, %s32, %s33
      %p37 = pneg %p31
      %p38 = scmp.eq.s32.totalorder %s22, 1
      %p39 = por %p37, %p38
      %p40 = scmp.ne.s32.totalorder %s32, %s35
      %p41 = scmp.eq.s32.totalorder %s22, 0
      %p42 = por %p40, %p41
      %p43 = scmp.ne.s32.totalorder %s32, %s35
      %p44 = scmp.eq.s32.totalorder %s27, 1
      %p45 = por %p43, %p44
      %p46 = scmp.ne.s32.totalorder %s35, %s36
      %p47 = scmp.eq.s32.totalorder %s27, 0
      %p48 = por %p46, %p47
      %p49 = scmp.ne.s32.totalorder %s35, %s36
      %p50 = scmp.eq.s32.totalorder %s28, 1
      %p51 = por %p49, %p50
      %p53 = scmp.ne.s32.totalorder %s36, %s52
      %p54 = scmp.eq.s32.totalorder %s28, 0
      %p55 = por %p53, %p54
      %s57 = sadd.s32 %s56, 1
      %p60 = scmp.eq.s32.totalorder %s22, 1
      %p61 = scmp.ne.s32.totalorder %s56, %s58
      %p62 = scmp.eq.s32.totalorder %s22, 0
      %p63 = por %p61, %p62
      %p64 = scmp.ne.s32.totalorder %s56, %s58
      %p65 = scmp.eq.s32.totalorder %s27, 1
      %p66 = por %p64, %p65
      %p67 = scmp.ne.s32.totalorder %s58, %s59
      %p68 = scmp.eq.s32.totalorder %s27, 0
      %p69 = por %p67, %p68
      %p70 = scmp.ne.s32.totalorder %s58, %s59
      %p71 = scmp.eq.s32.totalorder %s28, 1
      %p72 = por %p70, %p71
      %p74 = scmp.ne.s32.totalorder %s59, %s73
      %p75 = scmp.eq.s32.totalorder %s28, 0
      %p76 = por %p74, %p75
      %s78 = sadd.s32 %s77, 1
      %p81 = scmp.eq.s32.totalorder %s22, 1
      %p82 = scmp.ne.s32.totalorder %s77, %s79
      %p83 = scmp.eq.s32.totalorder %s22, 0
      %p84 = por %p82, %p83
      %p85 = scmp.ne.s32.totalorder %s77, %s79
      %p86 = scmp.eq.s32.totalorder %s27, 1
      %p87 = por %p85, %p86
      %p88 = scmp.ne.s32.totalorder %s79, %s80
      %p89 = scmp.eq.s32.totalorder %s27, 0
      %p90 = por %p88, %p89
      %p91 = scmp.ne.s32.totalorder %s79, %s80
      %p92 = scmp.eq.s32.totalorder %s28, 1
      %p93 = por %p91, %p92
      %p95 = scmp.ne.s32.totalorder %s80, %s94
      %p96 = scmp.eq.s32.totalorder %s28, 0
      %p97 = por %p95, %p96
      %s99 = sadd.s32 %s98, 1
      %p102 = scmp.eq.s32.totalorder %s22, 1
      %p103 = scmp.ne.s32.totalorder %s98, %s100
      %p104 = scmp.eq.s32.totalorder %s22, 0
      %p105 = por %p103, %p104
      %p106 = scmp.ne.s32.totalorder %s98, %s100
      %p107 = scmp.eq.s32.totalorder %s27, 1
      %p108 = por %p106, %p107
      %p109 = scmp.ne.s32.totalorder %s100, %s101
      %p110 = scmp.eq.s32.totalorder %s27, 0
      %p111 = por %p109, %p110
      %p112 = scmp.ne.s32.totalorder %s100, %s101
      %p113 = scmp.eq.s32.totalorder %s28, 1
      %p114 = por %p112, %p113
      %p116 = scmp.ne.s32.totalorder %s101, %s115
      %p117 = scmp.eq.s32.totalorder %s28, 0
      %p118 = por %p116, %p117
      %s120 = sadd.s32 %s119, 1
      %p123 = scmp.eq.s32.totalorder %s22, 1
      %p124 = scmp.ne.s32.totalorder %s119, %s121
      %p125 = scmp.eq.s32.totalorder %s22, 0
      %p126 = por %p124, %p125
      %p127 = scmp.ne.s32.totalorder %s119, %s121
      %p128 = scmp.eq.s32.totalorder %s27, 1
      %p129 = por %p127, %p128
      %p130 = scmp.ne.s32.totalorder %s121, %s122
      %p131 = scmp.eq.s32.totalorder %s27, 0
      %p132 = por %p130, %p131
      %p133 = scmp.ne.s32.totalorder %s121, %s122
      %p134 = scmp.eq.s32.totalorder %s28, 1
      %p135 = por %p133, %p134
      %p137 = scmp.ne.s32.totalorder %s122, %s136
      %p138 = scmp.eq.s32.totalorder %s28, 0
      %p139 = por %p137, %p138
      %s141 = sadd.s32 %s140, 1
      %p144 = scmp.eq.s32.totalorder %s22, 1
      %p145 = scmp.ne.s32.totalorder %s140, %s142
      %p146 = scmp.eq.s32.totalorder %s22, 0
      %p147 = por %p145, %p146
      %p148 = scmp.ne.s32.totalorder %s140, %s142
      %p149 = scmp.eq.s32.totalorder %s27, 1
      %p150 = por %p148, %p149
      %p151 = scmp.ne.s32.totalorder %s142, %s143
      %p152 = scmp.eq.s32.totalorder %s27, 0
      %p153 = por %p151, %p152
      %p154 = scmp.ne.s32.totalorder %s142, %s143
      %p155 = scmp.eq.s32.totalorder %s28, 1
      %p156 = por %p154, %p155
      %p158 = scmp.ne.s32.totalorder %s143, %s157
      %p159 = scmp.eq.s32.totalorder %s28, 0
      %p160 = por %p158, %p159
      %s162 = sadd.s32 %s161, 1
      %p165 = scmp.eq.s32.totalorder %s22, 1
      %p166 = scmp.ne.s32.totalorder %s161, %s163
      %p167 = scmp.eq.s32.totalorder %s22, 0
      %p168 = por %p166, %p167
      %p169 = scmp.ne.s32.totalorder %s161, %s163
      %p170 = scmp.eq.s32.totalorder %s27, 1
      %p171 = por %p169, %p170
      %p172 = scmp.ne.s32.totalorder %s163, %s164
      %p173 = scmp.eq.s32.totalorder %s27, 0
      %p174 = por %p172, %p173
      %p175 = scmp.ne.s32.totalorder %s163, %s164
      %p176 = scmp.eq.s32.totalorder %s28, 1
      %p177 = por %p175, %p176
      %p179 = scmp.ne.s32.totalorder %s164, %s178
      %p180 = scmp.eq.s32.totalorder %s28, 0
      %p181 = por %p179, %p180
      %s183 = sadd.s32 %s182, 1
      %p186 = scmp.eq.s32.totalorder %s22, 1
      %p187 = scmp.ne.s32.totalorder %s182, %s184
      %p188 = scmp.eq.s32.totalorder %s22, 0
      %p189 = por %p187, %p188
      %p190 = scmp.ne.s32.totalorder %s182, %s184
      %p191 = scmp.eq.s32.totalorder %s27, 1
      %p192 = por %p190, %p191
      %p193 = scmp.ne.s32.totalorder %s184, %s185
      %p194 = scmp.eq.s32.totalorder %s27, 0
      %p195 = por %p193, %p194
      %p196 = scmp.ne.s32.totalorder %s184, %s185
      %p197 = scmp.eq.s32.totalorder %s28, 1
      %p198 = por %p196, %p197
      %p200 = scmp.ne.s32.totalorder %s185, %s199
      %p201 = scmp.eq.s32.totalorder %s28, 0
      %p202 = por %p200, %p201
      %s204 = sadd.s32 %s203, 1
      %p207 = scmp.eq.s32.totalorder %s22, 1
      %p208 = scmp.ne.s32.totalorder %s203, %s205
      %p209 = scmp.eq.s32.totalorder %s22, 0
      %p210 = por %p208, %p209
      %p211 = scmp.ne.s32.totalorder %s203, %s205
      %p212 = scmp.eq.s32.totalorder %s27, 1
      %p213 = por %p211, %p212
      %p214 = scmp.ne.s32.totalorder %s205, %s206
      %p215 = scmp.eq.s32.totalorder %s27, 0
      %p216 = por %p214, %p215
      %p217 = scmp.ne.s32.totalorder %s205, %s206
      %p218 = scmp.eq.s32.totalorder %s28, 1
      %p219 = por %p217, %p218
      %p221 = scmp.ne.s32.totalorder %s206, %s220
      %p222 = scmp.eq.s32.totalorder %s28, 0
      %p223 = por %p221, %p222
      %s225 = sadd.s32 %s224, 1
      %p228 = scmp.eq.s32.totalorder %s22, 1
      %p229 = scmp.ne.s32.totalorder %s224, %s226
      %p230 = scmp.eq.s32.totalorder %s22, 0
      %p231 = por %p229, %p230
      %p232 = scmp.ne.s32.totalorder %s224, %s226
      %p233 = scmp.eq.s32.totalorder %s27, 1
      %p234 = por %p232, %p233
      %p235 = scmp.ne.s32.totalorder %s226, %s227
      %p236 = scmp.eq.s32.totalorder %s27, 0
      %p237 = por %p235, %p236
      %p238 = scmp.ne.s32.totalorder %s226, %s227
      %p239 = scmp.eq.s32.totalorder %s28, 1
      %p240 = por %p238, %p239
      %p242 = scmp.ne.s32.totalorder %s227, %s241
      %p243 = scmp.eq.s32.totalorder %s28, 0
      %p244 = por %p242, %p243
      %s246 = sadd.s32 %s245, 1
      %p249 = scmp.eq.s32.totalorder %s22, 1
      %p250 = scmp.ne.s32.totalorder %s245, %s247
      %p251 = scmp.eq.s32.totalorder %s22, 0
      %p252 = por %p250, %p251
      %p253 = scmp.ne.s32.totalorder %s245, %s247
      %p254 = scmp.eq.s32.totalorder %s27, 1
      %p255 = por %p253, %p254
      %p256 = scmp.ne.s32.totalorder %s247, %s248
      %p257 = scmp.eq.s32.totalorder %s27, 0
      %p258 = por %p256, %p257
      %p259 = scmp.ne.s32.totalorder %s247, %s248
      %p260 = scmp.eq.s32.totalorder %s28, 1
      %p261 = por %p259, %p260
      %p263 = scmp.ne.s32.totalorder %s248, %s262
      %p264 = scmp.eq.s32.totalorder %s28, 0
      %p265 = por %p263, %p264
      %s266 = ssub.s32 %s22, %s29
      %p267 = scmp.eq.s32.totalorder %s266, 0
      %s269 = sadd.s32 %s268, 1
      %s270 = scalar_select %p267, %s268, %s269
      %p273 = pneg %p267
      %p274 = scmp.eq.s32.totalorder %s22, 1
      %p275 = por %p273, %p274
      %p276 = scmp.ne.s32.totalorder %s268, %s271
      %p277 = scmp.eq.s32.totalorder %s22, 0
      %p278 = por %p276, %p277
      %p279 = scmp.ne.s32.totalorder %s268, %s271
      %p280 = scmp.eq.s32.totalorder %s27, 1
      %p281 = por %p279, %p280
      %p282 = scmp.ne.s32.totalorder %s271, %s272
      %p283 = scmp.eq.s32.totalorder %s27, 0
      %p284 = por %p282, %p283
      %p285 = scmp.ne.s32.totalorder %s271, %s272
      %p286 = scmp.eq.s32.totalorder %s28, 1
      %p287 = por %p285, %p286
      %p289 = scmp.ne.s32.totalorder %s272, %s288
      %p290 = scmp.eq.s32.totalorder %s28, 0
      %p291 = por %p289, %p290
      %p292 = scmp.le.s32.totalorder 1, %s22
      %p293 = scmp.lt.s32.totalorder %s22, 3
      %p294 = pnand %p292, %p293
      %p295 = pneg %p294
      // Predicated region
      $region9: #{net_forward.1} parent=5 // pred_check
        _
      $region10: #{net_forward.1} parent=5 // pred_check_branch
        %297 = sbr.rel (%p294) target = $region12
      $region11: #{net_forward.1} parent=5 // pred_region
        %s298 = ssub.s32 %s22, 1
        // Predicated region
        $region13: #{net_forward.1} parent=11 // pred_check
          %p299 = pneg %p69
        $region14: #{net_forward.1} parent=11 // pred_check_branch
          %301 = sbr.rel (%p299) target = $region16
        $region15: #{net_forward.1} parent=11 // pred_region
          _
        $region16: #{net_forward.1} parent=11 // pred_fallthru
          _
        // Predicated region
        $region17: #{net_forward.1} parent=11 // pred_check
          %p302 = pneg %p90
        $region18: #{net_forward.1} parent=11 // pred_check_branch
          %304 = sbr.rel (%p302) target = $region20
        $region19: #{net_forward.1} parent=11 // pred_region
          _
        $region20: #{net_forward.1} parent=11 // pred_fallthru
          _
        // Predicated region
        $region21: #{net_forward.1} parent=11 // pred_check
          %p305 = pneg %p111
        $region22: #{net_forward.1} parent=11 // pred_check_branch
          %307 = sbr.rel (%p305) target = $region24
        $region23: #{net_forward.1} parent=11 // pred_region
          _
        $region24: #{net_forward.1} parent=11 // pred_fallthru
          _
        // Predicated region
        $region25: #{net_forward.1} parent=11 // pred_check
          %p308 = pneg %p132
        $region26: #{net_forward.1} parent=11 // pred_check_branch
          %310 = sbr.rel (%p308) target = $region28
        $region27: #{net_forward.1} parent=11 // pred_region
          _
        $region28: #{net_forward.1} parent=11 // pred_fallthru
          _
        // Predicated region
        $region29: #{net_forward.1} parent=11 // pred_check
          %p311 = pneg %p153
        $region30: #{net_forward.1} parent=11 // pred_check_branch
          %313 = sbr.rel (%p311) target = $region32
        $region31: #{net_forward.1} parent=11 // pred_region
          _
        $region32: #{net_forward.1} parent=11 // pred_fallthru
          _
        // Predicated region
        $region33: #{net_forward.1} parent=11 // pred_check
          %p314 = pneg %p174
        $region34: #{net_forward.1} parent=11 // pred_check_branch
          %316 = sbr.rel (%p314) target = $region36
        $region35: #{net_forward.1} parent=11 // pred_region
          _
        $region36: #{net_forward.1} parent=11 // pred_fallthru
          _
        // Predicated region
        $region37: #{net_forward.1} parent=11 // pred_check
          %p317 = pneg %p195
        $region38: #{net_forward.1} parent=11 // pred_check_branch
          %319 = sbr.rel (%p317) target = $region40
        $region39: #{net_forward.1} parent=11 // pred_region
          _
        $region40: #{net_forward.1} parent=11 // pred_fallthru
          _
        // Predicated region
        $region41: #{net_forward.1} parent=11 // pred_check
          %p320 = pneg %p216
        $region42: #{net_forward.1} parent=11 // pred_check_branch
          %322 = sbr.rel (%p320) target = $region44
        $region43: #{net_forward.1} parent=11 // pred_region
          _
        $region44: #{net_forward.1} parent=11 // pred_fallthru
          _
        // Predicated region
        $region45: #{net_forward.1} parent=11 // pred_check
          %p323 = pneg %p237
        $region46: #{net_forward.1} parent=11 // pred_check_branch
          %325 = sbr.rel (%p323) target = $region48
        $region47: #{net_forward.1} parent=11 // pred_region
          _
        $region48: #{net_forward.1} parent=11 // pred_fallthru
          _
        // Predicated region
        $region49: #{net_forward.1} parent=11 // pred_check
          %p326 = pneg %p258
        $region50: #{net_forward.1} parent=11 // pred_check_branch
          %328 = sbr.rel (%p326) target = $region52
        $region51: #{net_forward.1} parent=11 // pred_region
          _
        $region52: #{net_forward.1} parent=11 // pred_fallthru
          _
      $region12: #{net_forward.1} parent=5 // pred_fallthru
        _
      %p329 = scmp.lt.s32.totalorder %s22, 2
      // Predicated region
      $region53: #{net_forward.1} parent=5 // pred_check
        %p330 = pneg %p329
      $region54: #{net_forward.1} parent=5 // pred_check_branch
        %332 = sbr.rel (%p330) target = $region56
      $region55: #{net_forward.1} parent=5 // pred_region
        // Predicated region
        $region57: #{net_forward.1} parent=55 // pred_check
          %p333 = pneg %p42
        $region58: #{net_forward.1} parent=55 // pred_check_branch
          %335 = sbr.rel (%p333) target = $region60
        $region59: #{net_forward.1} parent=55 // pred_region
          %p336 = scmp.lt.s32.totalorder %s22, 1
          %s337 = scalar_select %p336, %s22, 1
          %s338 = smul.addr %s337, 2
          %s339 = scalar_lea.vmem %s0, %s338
        $region60: #{net_forward.1} parent=55 // pred_fallthru
          _
      $region56: #{net_forward.1} parent=5 // pred_fallthru
        _
      %p340 = scmp.le.s32.totalorder 1, %s22
      %p341 = scmp.lt.s32.totalorder %s22, 3
      %p342 = pnand %p340, %p341
      %p343 = pneg %p342
      // Predicated region
      $region61: #{net_forward.1} parent=5 // pred_check
        _
      $region62: #{net_forward.1} parent=5 // pred_check_branch
        %345 = sbr.rel (%p342) target = $region64
      $region63: #{net_forward.1} parent=5 // pred_region
        %s346 = ssub.s32 %s22, 1
        %p347 = scmp.lt.s32.totalorder %s27, 1
        %s348 = scalar_select %p347, %s27, 1
        %s349 = smul.addr %s348, 2
        %s350 = scalar_lea.vmem %s0, %s349
        %p351 = pneg %p48
        %p352 = pneg %p45
        %p353 = pneg %p69
        %p354 = pneg %p66
        %p355 = pneg %p90
        %p356 = pneg %p87
        %p357 = pneg %p111
        %p358 = pneg %p108
        %p359 = pneg %p132
        %p360 = pneg %p129
        %p361 = pneg %p153
        %p362 = pneg %p150
        %p363 = pneg %p174
        %p364 = pneg %p171
        %p365 = pneg %p195
        %p366 = pneg %p192
        %p367 = pneg %p216
        %p368 = pneg %p213
        %p369 = pneg %p237
        %p370 = pneg %p234
        %p371 = pneg %p258
        %p372 = pneg %p255
        %p373 = pneg %p284
        %p374 = pneg %p281
        %s375 = sand.u32 %s271, 1
        %s376 = scalar_lea.sflag [#allocation4], %s375
        %s377 = sand.u32 %s271, 1
        %s378 = scalar_lea.vmem [#allocation3], %s377
        %p379 = scmp.lt.s32.totalorder %s27, 1
        %s380 = scalar_select %p379, %s27, 1
        %s381 = smul.addr %s380, 2
        %s382 = scalar_lea.vmem %s0, %s381
        %v383 = vld [vmem:[%s382] sm:$0x3]
        %v384 = vld [vmem:[%s1] sm:$0xff]
        %v385 = vld [vmem:[%s1 + $0x8] sm:$0xff]
        %v386 = vld [vmem:[%s1 + $0x10] sm:$0xff]
        %v387 = vld [vmem:[%s1 + $0x18] sm:$0xff]
        %v388 = vld [vmem:[%s2] sm:$0xff]
        %v389 = vld [vmem:[%s2 + $0x8] sm:$0xff]
        %v390 = vld [vmem:[%s2 + $0x10] sm:$0xff]
        %v391 = vld [vmem:[%s2 + $0x18] sm:$0xff]
        %v392 = vld [vmem:[%s3] sm:$0xff]
        %v393 = vld [vmem:[%s3 + $0x8] sm:$0xff]
        %v394 = vld [vmem:[%s3 + $0x10] sm:$0xff]
        %v395 = vld [vmem:[%s3 + $0x18] sm:$0xff]
        %v396 = vld [vmem:[%s4] sm:$0xff]
        %v397 = vld [vmem:[%s4 + $0x8] sm:$0xff]
        %v398 = vld [vmem:[%s4 + $0x10] sm:$0xff]
        %v399 = vld [vmem:[%s4 + $0x18] sm:$0xff]
        %401 = vset.pattern.permute.xlu0 0
        %402 = vperm.xlu0 %401, %v388
        %v403 = vpop.permute.xlu0 %402
        %406 = vset.pattern.permute.xlu0 0
        %407 = vperm.xlu0 %406, %v389
        %v408 = vpop.permute.xlu0 %407
        %411 = vset.pattern.permute.xlu0 0
        %412 = vperm.xlu0 %411, %v390
        %v413 = vpop.permute.xlu0 %412
        %416 = vset.pattern.permute.xlu0 0
        %417 = vperm.xlu0 %416, %v391
        %v418 = vpop.permute.xlu0 %417
        %vm420 = vcmask 15360
        %v422 = vsel %vm420, %v384, 0
        %v425 = vsel %vm420, %v385, 0
        %v428 = vsel %vm420, %v386, 0
        %v431 = vsel %vm420, %v387, 0
        %vm433 = vcmask 1041408
        %v435 = vsel %vm433, %v383, 0
        %437 = vmatprep.subr.mxu0 0.0
        %438 = vmatpush1.msra.mxu0 %v435
        %439 = vmatprep.subr.mxu0 0.0
        %440 = vmatpush1.msra.mxu0 0.0
        %441 = vmatprep.subr.mxu0 0.0
        %442 = vmatpush1.msra.mxu0 0.0
        %443 = vmatprep.subr.mxu0 0.0
        %444 = vmatpush1.msra.mxu0 0.0
        %445 = vmatprep.subr.mxu0 0.0
        %446 = vmatpush1.msra.mxu0 0.0
        %447 = vmatprep.subr.mxu0 0.0
        %448 = vmatpush1.msra.mxu0 0.0
        %449 = vmatprep.subr.mxu0 0.0
        %450 = vmatpush1.msra.mxu0 0.0
        %451 = vmatprep.subr.mxu0 0.0
        %452 = vmatpush1.msra.mxu0 0.0
        %453 = vmatprep.subr.mxu0 0.0
        %454 = vmatpush1.msra.mxu0 0.0
        %455 = vmatprep.subr.mxu0 0.0
        %456 = vmatpush1.msra.mxu0 0.0
        %457 = vmatprep.subr.mxu0 0.0
        %458 = vmatpush1.msra.mxu0 0.0
        %459 = vmatprep.subr.mxu0 0.0
        %460 = vmatpush1.msra.mxu0 0.0
        %461 = vmatprep.subr.mxu0 0.0
        %462 = vmatpush1.msra.mxu0 0.0
        %463 = vmatprep.subr.mxu0 0.0
        %464 = vmatpush1.msra.mxu0 0.0
        %465 = vmatprep.subr.mxu0 0.0
        %466 = vmatpush1.msra.mxu0 0.0
        %467 = vmatprep.subr.mxu0 0.0
        %468 = vmatpush1.msra.mxu0 0.0
        %469 = vmatprep.subr.mxu0 0.0
        %470 = vmatpush1.msra.mxu0 0.0
        %471 = vmatprep.subr.mxu0 0.0
        %472 = vmatpush1.msra.mxu0 0.0
        %473 = vmatprep.subr.mxu0 0.0
        %474 = vmatpush1.msra.mxu0 0.0
        %475 = vmatprep.subr.mxu0 0.0
        %476 = vmatpush1.msra.mxu0 0.0
        %477 = vmatprep.subr.mxu0 0.0
        %478 = vmatpush1.msra.mxu0 0.0
        %479 = vmatprep.subr.mxu0 0.0
        %480 = vmatpush1.msra.mxu0 0.0
        %481 = vmatprep.subr.mxu0 0.0
        %482 = vmatpush1.msra.mxu0 0.0
        %483 = vmatprep.subr.mxu0 0.0
        %484 = vmatpush1.msra.mxu0 0.0
        %485 = vmatprep.subr.mxu0 0.0
        %486 = vmatpush1.msra.mxu0 0.0
        %487 = vmatprep.subr.mxu0 0.0
        %488 = vmatpush1.msra.mxu0 0.0
        %489 = vmatprep.subr.mxu0 0.0
        %490 = vmatpush1.msra.mxu0 0.0
        %491 = vmatprep.subr.mxu0 0.0
        %492 = vmatpush1.msra.mxu0 0.0
        %493 = vmatprep.subr.mxu0 0.0
        %494 = vmatpush1.msra.mxu0 0.0
        %495 = vmatprep.subr.mxu0 0.0
        %496 = vmatpush1.msra.mxu0 0.0
        %497 = vmatprep.subr.mxu0 0.0
        %498 = vmatpush1.msra.mxu0 0.0
        %499 = vmatprep.subr.mxu0 0.0
        %500 = vmatpush1.msra.mxu0 0.0
        %501 = vmatprep.mubr.f32.mxu0 0.0
        %502 = vmatmul.mubr.f32.gmra.mrb[0].mxu0 %v422
        %v503 = vpop.f32.mrb[0].mxu0
        %v504 = vadd.f32 %v403, %v503
        %v505 = vpop.f32.mrb[0].mxu0
        %506 = vmatprep.mubr.f32.mxu0 0.0
        %507 = vmatmul.mubr.f32.gmra.mrb[0].mxu0 %v425
        %v508 = vpop.f32.mrb[0].mxu0
        %v509 = vadd.f32 %v408, %v508
        %v510 = vpop.f32.mrb[0].mxu0
        %511 = vmatprep.mubr.f32.mxu0 0.0
        %512 = vmatmul.mubr.f32.gmra.mrb[0].mxu0 %v428
        %v513 = vpop.f32.mrb[0].mxu0
        %v514 = vadd.f32 %v413, %v513
        %v515 = vpop.f32.mrb[0].mxu0
        %516 = vmatprep.mubr.f32.mxu0 0.0
        %517 = vmatmul.mubr.f32.gmra.mrb[0].mxu0 %v431
        %v518 = vpop.f32.mrb[0].mxu0
        %v519 = vadd.f32 %v418, %v518
        %v520 = vpop.f32.mrb[0].mxu0
        %521 = vdwg.mxu0
        %v522 = vand.u32 2147483647, %v504
        %vm523 = vcmp.le.f32.partialorder %v522, 0.7853982
        %vm524 = vcmp.lt.s32.totalorder %v504, 0
        %v525 = vand.u32 %v504, 2139095040
        %v526 = vshrl.u32 %v525, 23
        %v527 = vsub.s32 %v526, 127
        %v528 = vand.u32 2147483647, %v504
        %v529 = vand.u32 %v528, 8388607
        %v530 = vor.u32 %v529, 8388608
        %v531 = vsub.s32 0, %v530
        %v532 = vadd.s32 %v527, 1
        %vm533 = vcmp.gt.s32.totalorder %v532, 0
        %v534 = vsel %vm533, %v532, 0
        %v535 = vshrl.u32 %v534, 5
        %v536 = vand.u32 %v534, 31
        %v537 = vsub.s32 32, %v536
        %v538 = vshrl.u32 683565275, %v537
        %v539 = vshll.u32 683565275, %v536
        %v540 = vshrl.u32 2475754826, %v537
        %v541 = vor.u32 %v539, %v540
        %v542 = vshll.u32 2475754826, %v536
        %v543 = vshrl.u32 2131351028, %v537
        %v544 = vor.u32 %v542, %v543
        %v545 = vshll.u32 2131351028, %v536
        %v546 = vshrl.u32 2102212464, %v537
        %v547 = vor.u32 %v545, %v546
        %v548 = vshll.u32 2102212464, %v536
        %v549 = vshrl.u32 920167782, %v537
        %v550 = vor.u32 %v548, %v549
        %v551 = vshll.u32 920167782, %v536
        %v552 = vshrl.u32 1326507024, %v537
        %v553 = vor.u32 %v551, %v552
        %vm554 = vcmp.lt.s32.totalorder %v535, 1
        %vm555 = vcmp.lt.s32.totalorder %v535, 2
        %vm556 = vcmp.lt.s32.totalorder %v535, 3
        %vm557 = vcmp.lt.s32.totalorder %v535, 4
        %v558 = vsel %vm554, %v538, %v541
        %v559 = vsel %vm557, %v547, 2102212464
        %v560 = vsel %vm556, %v544, %v559
        %v561 = vsel %vm555, %v558, %v560
        %v562 = vsel %vm554, %v541, %v544
        %v563 = vsel %vm557, %v550, 920167782
        %v564 = vsel %vm556, %v547, %v563
        %v565 = vsel %vm555, %v562, %v564
        %v566 = vsel %vm554, %v544, %v547
        %v567 = vsel %vm557, %v553, 1326507024
        %v568 = vsel %vm556, %v550, %v567
        %v569 = vsel %vm555, %v566, %v568
        %v570 = vshll.u32 %v530, 8
        %v571 = vmul.u32.u64.compose %v570, %v569
        %v572 = vextract.low.u32 %v571
        %v573 = vextract.high.u32 %v571
        %v574 = vmul.u32.u64.compose %v570, %v565
        %v575 = vextract.low.u32 %v574
        %v576 = vextract.high.u32 %v574
        %v577 = vmul.u32 %v570, %v561
        %v578 = vadd.s32 %v573, %v575
        %vm579 = vc.u32 %v573, %v575
        %v580 = vadd.s32 %v576, 1
        %v581 = vsel %vm579, %v580, %v576
        %v582 = vadd.s32 %v577, %v581
        %v583 = vadd.s32 %v582, 536870912
        %v584 = vshrl.u32 %v583, 30
        %v585 = vshll.u32 %v584, 30
        %v586 = vsub.s32 %v582, %v585
        %vm587 = vcmp.lt.s32.totalorder %v586, 0
        %v588 = vsub.s32 0, %v586
        %v589 = vsel %vm587, %v588, %v586
        %v590 = vclz %v589
        %v591 = vsub.s32 %v590, 2
        %vm592 = vcmp.gt.s32.totalorder 0, %v591
        %v593 = vsel %vm592, 0, %v591
        %v594 = vsub.s32 32, %v593
        %v595 = vshll.u32 %v586, %v593
        %v596 = vshrl.u32 %v578, %v594
        %v597 = vor.u32 %v595, %v596
        %v598 = vsub.s32 4294967266, %v593
        %v599 = vadd.s32 %v598, 127
        %v600 = vshll.u32 %v599, 23
        %v601 = vor.u32 4788187, %v600
        %v602 = vand.u32 2147483647, %v601
        %v604 = vcvt.s32.f32 %v597
        %v605 = vmul.f32 %v604, %v602
        %v606 = vxor.u32 %v605, 2147483648
        %v607 = vsel %vm524, %v606, %v605
        %v608 = vsub.s32 4, %v584
        %v609 = vsel %vm524, %v608, %v584
        %v610 = vsel %vm523, %v504, %v607
        %v611 = vsel %vm523, 0, %v609
        %v612 = vcosq.f32.pop %v610
        %v613 = vsinq.f32.pop %v610
        %vm614 = vweird.f32 %v504
        %v615 = vadd.s32 %v611, 3
        %v616 = vand.u32 %v615, 3
        %vm617 = vcmp.lt.s32.totalorder %v616, 2
        %vm618 = vcmp.eq.s32.totalorder %v616, 0
        %v619 = vxor.u32 %v613, 2147483648
        %v620 = vsel %vm618, %v612, %v619
        %vm621 = vcmp.eq.s32.totalorder %v616, 2
        %v622 = vxor.u32 %v612, 2147483648
        %v623 = vsel %vm621, %v622, %v613
        %v624 = vsel %vm617, %v620, %v623
        %v625 = vsel %vm614, nan, %v624
        %v626 = vand.u32 2147483647, %v509
        %vm627 = vcmp.le.f32.partialorder %v626, 0.7853982
        %vm628 = vcmp.lt.s32.totalorder %v509, 0
        %v629 = vand.u32 %v509, 2139095040
        %v630 = vshrl.u32 %v629, 23
        %v631 = vsub.s32 %v630, 127
        %v632 = vand.u32 2147483647, %v509
        %v633 = vand.u32 %v632, 8388607
        %v634 = vor.u32 %v633, 8388608
        %v635 = vsub.s32 0, %v634
        %v636 = vadd.s32 %v631, 1
        %vm637 = vcmp.gt.s32.totalorder %v636, 0
        %v638 = vsel %vm637, %v636, 0
        %v639 = vshrl.u32 %v638, 5
        %v640 = vand.u32 %v638, 31
        %v641 = vsub.s32 32, %v640
        %v642 = vshrl.u32 683565275, %v641
        %v643 = vshll.u32 683565275, %v640
        %v644 = vshrl.u32 2475754826, %v641
        %v645 = vor.u32 %v643, %v644
        %v646 = vshll.u32 2475754826, %v640
        %v647 = vshrl.u32 2131351028, %v641
        %v648 = vor.u32 %v646, %v647
        %v649 = vshll.u32 2131351028, %v640
        %v650 = vshrl.u32 2102212464, %v641
        %v651 = vor.u32 %v649, %v650
        %v652 = vshll.u32 2102212464, %v640
        %v653 = vshrl.u32 920167782, %v641
        %v654 = vor.u32 %v652, %v653
        %v655 = vshll.u32 920167782, %v640
        %v656 = vshrl.u32 1326507024, %v641
        %v657 = vor.u32 %v655, %v656
        %vm658 = vcmp.lt.s32.totalorder %v639, 1
        %vm659 = vcmp.lt.s32.totalorder %v639, 2
        %vm660 = vcmp.lt.s32.totalorder %v639, 3
        %vm661 = vcmp.lt.s32.totalorder %v639, 4
        %v662 = vsel %vm658, %v642, %v645
        %v663 = vsel %vm661, %v651, 2102212464
        %v664 = vsel %vm660, %v648, %v663
        %v665 = vsel %vm659, %v662, %v664
        %v666 = vsel %vm658, %v645, %v648
        %v667 = vsel %vm661, %v654, 920167782
        %v668 = vsel %vm660, %v651, %v667
        %v669 = vsel %vm659, %v666, %v668
        %v670 = vsel %vm658, %v648, %v651
        %v671 = vsel %vm661, %v657, 1326507024
        %v672 = vsel %vm660, %v654, %v671
        %v673 = vsel %vm659, %v670, %v672
        %v674 = vshll.u32 %v634, 8
        %v675 = vmul.u32.u64.compose %v674, %v673
        %v676 = vextract.low.u32 %v675
        %v677 = vextract.high.u32 %v675
        %v678 = vmul.u32.u64.compose %v674, %v669
        %v679 = vextract.low.u32 %v678
        %v680 = vextract.high.u32 %v678
        %v681 = vmul.u32 %v674, %v665
        %v682 = vadd.s32 %v677, %v679
        %vm683 = vc.u32 %v677, %v679
        %v684 = vadd.s32 %v680, 1
        %v685 = vsel %vm683, %v684, %v680
        %v686 = vadd.s32 %v681, %v685
        %v687 = vadd.s32 %v686, 536870912
        %v688 = vshrl.u32 %v687, 30
        %v689 = vshll.u32 %v688, 30
        %v690 = vsub.s32 %v686, %v689
        %vm691 = vcmp.lt.s32.totalorder %v690, 0
        %v692 = vsub.s32 0, %v690
        %v693 = vsel %vm691, %v692, %v690
        %v694 = vclz %v693
        %v695 = vsub.s32 %v694, 2
        %vm696 = vcmp.gt.s32.totalorder 0, %v695
        %v697 = vsel %vm696, 0, %v695
        %v698 = vsub.s32 32, %v697
        %v699 = vshll.u32 %v690, %v697
        %v700 = vshrl.u32 %v682, %v698
        %v701 = vor.u32 %v699, %v700
        %v702 = vsub.s32 4294967266, %v697
        %v703 = vadd.s32 %v702, 127
        %v704 = vshll.u32 %v703, 23
        %v705 = vor.u32 4788187, %v704
        %v706 = vand.u32 2147483647, %v705
        %v708 = vcvt.s32.f32 %v701
        %v709 = vmul.f32 %v708, %v706
        %v710 = vxor.u32 %v709, 2147483648
        %v711 = vsel %vm628, %v710, %v709
        %v712 = vsub.s32 4, %v688
        %v713 = vsel %vm628, %v712, %v688
        %v714 = vsel %vm627, %v509, %v711
        %v715 = vsel %vm627, 0, %v713
        %v716 = vcosq.f32.pop %v714
        %v717 = vsinq.f32.pop %v714
        %vm718 = vweird.f32 %v509
        %v719 = vadd.s32 %v715, 3
        %v720 = vand.u32 %v719, 3
        %vm721 = vcmp.lt.s32.totalorder %v720, 2
        %vm722 = vcmp.eq.s32.totalorder %v720, 0
        %v723 = vxor.u32 %v717, 2147483648
        %v724 = vsel %vm722, %v716, %v723
        %vm725 = vcmp.eq.s32.totalorder %v720, 2
        %v726 = vxor.u32 %v716, 2147483648
        %v727 = vsel %vm725, %v726, %v717
        %v728 = vsel %vm721, %v724, %v727
        %v729 = vsel %vm718, nan, %v728
        %v730 = vand.u32 2147483647, %v514
        %vm731 = vcmp.le.f32.partialorder %v730, 0.7853982
        %vm732 = vcmp.lt.s32.totalorder %v514, 0
        %v733 = vand.u32 %v514, 2139095040
        %v734 = vshrl.u32 %v733, 23
        %v735 = vsub.s32 %v734, 127
        %v736 = vand.u32 2147483647, %v514
        %v737 = vand.u32 %v736, 8388607
        %v738 = vor.u32 %v737, 8388608
        %v739 = vsub.s32 0, %v738
        %v740 = vadd.s32 %v735, 1
        %vm741 = vcmp.gt.s32.totalorder %v740, 0
        %v742 = vsel %vm741, %v740, 0
        %v743 = vshrl.u32 %v742, 5
        %v744 = vand.u32 %v742, 31
        %v745 = vsub.s32 32, %v744
        %v746 = vshrl.u32 683565275, %v745
        %v747 = vshll.u32 683565275, %v744
        %v748 = vshrl.u32 2475754826, %v745
        %v749 = vor.u32 %v747, %v748
        %v750 = vshll.u32 2475754826, %v744
        %v751 = vshrl.u32 2131351028, %v745
        %v752 = vor.u32 %v750, %v751
        %v753 = vshll.u32 2131351028, %v744
        %v754 = vshrl.u32 2102212464, %v745
        %v755 = vor.u32 %v753, %v754
        %v756 = vshll.u32 2102212464, %v744
        %v757 = vshrl.u32 920167782, %v745
        %v758 = vor.u32 %v756, %v757
        %v759 = vshll.u32 920167782, %v744
        %v760 = vshrl.u32 1326507024, %v745
        %v761 = vor.u32 %v759, %v760
        %vm762 = vcmp.lt.s32.totalorder %v743, 1
        %vm763 = vcmp.lt.s32.totalorder %v743, 2
        %vm764 = vcmp.lt.s32.totalorder %v743, 3
        %vm765 = vcmp.lt.s32.totalorder %v743, 4
        %v766 = vsel %vm762, %v746, %v749
        %v767 = vsel %vm765, %v755, 2102212464
        %v768 = vsel %vm764, %v752, %v767
        %v769 = vsel %vm763, %v766, %v768
        %v770 = vsel %vm762, %v749, %v752
        %v771 = vsel %vm765, %v758, 920167782
        %v772 = vsel %vm764, %v755, %v771
        %v773 = vsel %vm763, %v770, %v772
        %v774 = vsel %vm762, %v752, %v755
        %v775 = vsel %vm765, %v761, 1326507024
        %v776 = vsel %vm764, %v758, %v775
        %v777 = vsel %vm763, %v774, %v776
        %v778 = vshll.u32 %v738, 8
        %v779 = vmul.u32.u64.compose %v778, %v777
        %v780 = vextract.low.u32 %v779
        %v781 = vextract.high.u32 %v779
        %v782 = vmul.u32.u64.compose %v778, %v773
        %v783 = vextract.low.u32 %v782
        %v784 = vextract.high.u32 %v782
        %v785 = vmul.u32 %v778, %v769
        %v786 = vadd.s32 %v781, %v783
        %vm787 = vc.u32 %v781, %v783
        %v788 = vadd.s32 %v784, 1
        %v789 = vsel %vm787, %v788, %v784
        %v790 = vadd.s32 %v785, %v789
        %v791 = vadd.s32 %v790, 536870912
        %v792 = vshrl.u32 %v791, 30
        %v793 = vshll.u32 %v792, 30
        %v794 = vsub.s32 %v790, %v793
        %vm795 = vcmp.lt.s32.totalorder %v794, 0
        %v796 = vsub.s32 0, %v794
        %v797 = vsel %vm795, %v796, %v794
        %v798 = vclz %v797
        %v799 = vsub.s32 %v798, 2
        %vm800 = vcmp.gt.s32.totalorder 0, %v799
        %v801 = vsel %vm800, 0, %v799
        %v802 = vsub.s32 32, %v801
        %v803 = vshll.u32 %v794, %v801
        %v804 = vshrl.u32 %v786, %v802
        %v805 = vor.u32 %v803, %v804
        %v806 = vsub.s32 4294967266, %v801
        %v807 = vadd.s32 %v806, 127
        %v808 = vshll.u32 %v807, 23
        %v809 = vor.u32 4788187, %v808
        %v810 = vand.u32 2147483647, %v809
        %v812 = vcvt.s32.f32 %v805
        %v813 = vmul.f32 %v812, %v810
        %v814 = vxor.u32 %v813, 2147483648
        %v815 = vsel %vm732, %v814, %v813
        %v816 = vsub.s32 4, %v792
        %v817 = vsel %vm732, %v816, %v792
        %v818 = vsel %vm731, %v514, %v815
        %v819 = vsel %vm731, 0, %v817
        %v820 = vcosq.f32.pop %v818
        %v821 = vsinq.f32.pop %v818
        %vm822 = vweird.f32 %v514
        %v823 = vadd.s32 %v819, 3
        %v824 = vand.u32 %v823, 3
        %vm825 = vcmp.lt.s32.totalorder %v824, 2
        %vm826 = vcmp.eq.s32.totalorder %v824, 0
        %v827 = vxor.u32 %v821, 2147483648
        %v828 = vsel %vm826, %v820, %v827
        %vm829 = vcmp.eq.s32.totalorder %v824, 2
        %v830 = vxor.u32 %v820, 2147483648
        %v831 = vsel %vm829, %v830, %v821
        %v832 = vsel %vm825, %v828, %v831
        %v833 = vsel %vm822, nan, %v832
        %v834 = vand.u32 2147483647, %v519
        %vm835 = vcmp.le.f32.partialorder %v834, 0.7853982
        %vm836 = vcmp.lt.s32.totalorder %v519, 0
        %v837 = vand.u32 %v519, 2139095040
        %v838 = vshrl.u32 %v837, 23
        %v839 = vsub.s32 %v838, 127
        %v840 = vand.u32 2147483647, %v519
        %v841 = vand.u32 %v840, 8388607
        %v842 = vor.u32 %v841, 8388608
        %v843 = vsub.s32 0, %v842
        %v844 = vadd.s32 %v839, 1
        %vm845 = vcmp.gt.s32.totalorder %v844, 0
        %v846 = vsel %vm845, %v844, 0
        %v847 = vshrl.u32 %v846, 5
        %v848 = vand.u32 %v846, 31
        %v849 = vsub.s32 32, %v848
        %v850 = vshrl.u32 683565275, %v849
        %v851 = vshll.u32 683565275, %v848
        %v852 = vshrl.u32 2475754826, %v849
        %v853 = vor.u32 %v851, %v852
        %v854 = vshll.u32 2475754826, %v848
        %v855 = vshrl.u32 2131351028, %v849
        %v856 = vor.u32 %v854, %v855
        %v857 = vshll.u32 2131351028, %v848
        %v858 = vshrl.u32 2102212464, %v849
        %v859 = vor.u32 %v857, %v858
        %v860 = vshll.u32 2102212464, %v848
        %v861 = vshrl.u32 920167782, %v849
        %v862 = vor.u32 %v860, %v861
        %v863 = vshll.u32 920167782, %v848
        %v864 = vshrl.u32 1326507024, %v849
        %v865 = vor.u32 %v863, %v864
        %vm866 = vcmp.lt.s32.totalorder %v847, 1
        %vm867 = vcmp.lt.s32.totalorder %v847, 2
        %vm868 = vcmp.lt.s32.totalorder %v847, 3
        %vm869 = vcmp.lt.s32.totalorder %v847, 4
        %v870 = vsel %vm866, %v850, %v853
        %v871 = vsel %vm869, %v859, 2102212464
        %v872 = vsel %vm868, %v856, %v871
        %v873 = vsel %vm867, %v870, %v872
        %v874 = vsel %vm866, %v853, %v856
        %v875 = vsel %vm869, %v862, 920167782
        %v876 = vsel %vm868, %v859, %v875
        %v877 = vsel %vm867, %v874, %v876
        %v878 = vsel %vm866, %v856, %v859
        %v879 = vsel %vm869, %v865, 1326507024
        %v880 = vsel %vm868, %v862, %v879
        %v881 = vsel %vm867, %v878, %v880
        %v882 = vshll.u32 %v842, 8
        %v883 = vmul.u32.u64.compose %v882, %v881
        %v884 = vextract.low.u32 %v883
        %v885 = vextract.high.u32 %v883
        %v886 = vmul.u32.u64.compose %v882, %v877
        %v887 = vextract.low.u32 %v886
        %v888 = vextract.high.u32 %v886
        %v889 = vmul.u32 %v882, %v873
        %v890 = vadd.s32 %v885, %v887
        %vm891 = vc.u32 %v885, %v887
        %v892 = vadd.s32 %v888, 1
        %v893 = vsel %vm891, %v892, %v888
        %v894 = vadd.s32 %v889, %v893
        %v895 = vadd.s32 %v894, 536870912
        %v896 = vshrl.u32 %v895, 30
        %v897 = vshll.u32 %v896, 30
        %v898 = vsub.s32 %v894, %v897
        %vm899 = vcmp.lt.s32.totalorder %v898, 0
        %v900 = vsub.s32 0, %v898
        %v901 = vsel %vm899, %v900, %v898
        %v902 = vclz %v901
        %v903 = vsub.s32 %v902, 2
        %vm904 = vcmp.gt.s32.totalorder 0, %v903
        %v905 = vsel %vm904, 0, %v903
        %v906 = vsub.s32 32, %v905
        %v907 = vshll.u32 %v898, %v905
        %v908 = vshrl.u32 %v890, %v906
        %v909 = vor.u32 %v907, %v908
        %v910 = vsub.s32 4294967266, %v905
        %v911 = vadd.s32 %v910, 127
        %v912 = vshll.u32 %v911, 23
        %v913 = vor.u32 4788187, %v912
        %v914 = vand.u32 2147483647, %v913
        %v916 = vcvt.s32.f32 %v909
        %v917 = vmul.f32 %v916, %v914
        %v918 = vxor.u32 %v917, 2147483648
        %v919 = vsel %vm836, %v918, %v917
        %v920 = vsub.s32 4, %v896
        %v921 = vsel %vm836, %v920, %v896
        %v922 = vsel %vm835, %v519, %v919
        %v923 = vsel %vm835, 0, %v921
        %v924 = vcosq.f32.pop %v922
        %v925 = vsinq.f32.pop %v922
        %vm926 = vweird.f32 %v519
        %v927 = vadd.s32 %v923, 3
        %v928 = vand.u32 %v927, 3
        %vm929 = vcmp.lt.s32.totalorder %v928, 2
        %vm930 = vcmp.eq.s32.totalorder %v928, 0
        %v931 = vxor.u32 %v925, 2147483648
        %v932 = vsel %vm930, %v924, %v931
        %vm933 = vcmp.eq.s32.totalorder %v928, 2
        %v934 = vxor.u32 %v924, 2147483648
        %v935 = vsel %vm933, %v934, %v925
        %v936 = vsel %vm929, %v932, %v935
        %v937 = vsel %vm926, nan, %v936
        %939 = vset.pattern.permute.xlu0 0
        %940 = vperm.xlu0 %939, %v396
        %v941 = vpop.permute.xlu0 %940
        %944 = vset.pattern.permute.xlu0 0
        %945 = vperm.xlu0 %944, %v397
        %v946 = vpop.permute.xlu0 %945
        %949 = vset.pattern.permute.xlu0 0
        %950 = vperm.xlu0 %949, %v398
        %v951 = vpop.permute.xlu0 %950
        %954 = vset.pattern.permute.xlu0 0
        %955 = vperm.xlu0 %954, %v399
        %v956 = vpop.permute.xlu0 %955
        %vm958 = vcmask 261120
        %v960 = vsel %vm958, %v392, 0
        %v963 = vsel %vm958, %v393, 0
        %v966 = vsel %vm958, %v394, 0
        %v969 = vsel %vm958, %v395, 0
        %971 = vmatprep.subr.mxu0 0.0
        %972 = vmatpush1.msra.mxu0 %v625
        %973 = vmatprep.subr.mxu0 0.0
        %974 = vmatpush1.msra.mxu0 %v729
        %975 = vmatprep.subr.mxu0 0.0
        %976 = vmatpush1.msra.mxu0 %v833
        %977 = vmatprep.subr.mxu0 0.0
        %978 = vmatpush1.msra.mxu0 %v937
        %979 = vmatprep.subr.mxu0 0.0
        %980 = vmatpush1.msra.mxu0 0.0
        %981 = vmatprep.subr.mxu0 0.0
        %982 = vmatpush1.msra.mxu0 0.0
        %983 = vmatprep.subr.mxu0 0.0
        %984 = vmatpush1.msra.mxu0 0.0
        %985 = vmatprep.subr.mxu0 0.0
        %986 = vmatpush1.msra.mxu0 0.0
        %987 = vmatprep.subr.mxu0 0.0
        %988 = vmatpush1.msra.mxu0 0.0
        %989 = vmatprep.subr.mxu0 0.0
        %990 = vmatpush1.msra.mxu0 0.0
        %991 = vmatprep.subr.mxu0 0.0
        %992 = vmatpush1.msra.mxu0 0.0
        %993 = vmatprep.subr.mxu0 0.0
        %994 = vmatpush1.msra.mxu0 0.0
        %995 = vmatprep.subr.mxu0 0.0
        %996 = vmatpush1.msra.mxu0 0.0
        %997 = vmatprep.subr.mxu0 0.0
        %998 = vmatpush1.msra.mxu0 0.0
        %999 = vmatprep.subr.mxu0 0.0
        %1000 = vmatpush1.msra.mxu0 0.0
        %1001 = vmatprep.subr.mxu0 0.0
        %1002 = vmatpush1.msra.mxu0 0.0
        %1003 = vmatprep.subr.mxu0 0.0
        %1004 = vmatpush1.msra.mxu0 0.0
        %1005 = vmatprep.subr.mxu0 0.0
        %1006 = vmatpush1.msra.mxu0 0.0
        %1007 = vmatprep.subr.mxu0 0.0
        %1008 = vmatpush1.msra.mxu0 0.0
        %1009 = vmatprep.subr.mxu0 0.0
        %1010 = vmatpush1.msra.mxu0 0.0
        %1011 = vmatprep.subr.mxu0 0.0
        %1012 = vmatpush1.msra.mxu0 0.0
        %1013 = vmatprep.subr.mxu0 0.0
        %1014 = vmatpush1.msra.mxu0 0.0
        %1015 = vmatprep.subr.mxu0 0.0
        %1016 = vmatpush1.msra.mxu0 0.0
        %1017 = vmatprep.subr.mxu0 0.0
        %1018 = vmatpush1.msra.mxu0 0.0
        %1019 = vmatprep.subr.mxu0 0.0
        %1020 = vmatpush1.msra.mxu0 0.0
        %1021 = vmatprep.subr.mxu0 0.0
        %1022 = vmatpush1.msra.mxu0 0.0
        %1023 = vmatprep.subr.mxu0 0.0
        %1024 = vmatpush1.msra.mxu0 0.0
        %1025 = vmatprep.subr.mxu0 0.0
        %1026 = vmatpush1.msra.mxu0 0.0
        %1027 = vmatprep.subr.mxu0 0.0
        %1028 = vmatpush1.msra.mxu0 0.0
        %1029 = vmatprep.subr.mxu0 0.0
        %1030 = vmatpush1.msra.mxu0 0.0
        %1031 = vmatprep.subr.mxu0 0.0
        %1032 = vmatpush1.msra.mxu0 0.0
        %1033 = vmatprep.subr.mxu0 0.0
        %1034 = vmatpush1.msra.mxu0 0.0
        %1035 = vmatprep.mubr.f32.mxu0 0.0
        %1036 = vmatmul.mubr.f32.gmra.mrb[0].mxu0 %v960
        %v1037 = vpop.f32.mrb[0].mxu0
        %v1038 = vadd.f32 %v941, %v1037
        %v1039 = vpop.f32.mrb[0].mxu0
        %1040 = vmatprep.mubr.f32.mxu0 0.0
        %1041 = vmatmul.mubr.f32.gmra.mrb[0].mxu0 %v963
        %v1042 = vpop.f32.mrb[0].mxu0
        %v1043 = vadd.f32 %v946, %v1042
        %v1044 = vpop.f32.mrb[0].mxu0
        %1045 = vmatprep.mubr.f32.mxu0 0.0
        %1046 = vmatmul.mubr.f32.gmra.mrb[0].mxu0 %v966
        %v1047 = vpop.f32.mrb[0].mxu0
        %v1048 = vadd.f32 %v951, %v1047
        %v1049 = vpop.f32.mrb[0].mxu0
        %1050 = vmatprep.mubr.f32.mxu0 0.0
        %1051 = vmatmul.mubr.f32.gmra.mrb[0].mxu0 %v969
        %v1052 = vpop.f32.mrb[0].mxu0
        %v1053 = vadd.f32 %v956, %v1052
        %v1054 = vpop.f32.mrb[0].mxu0
        %1055 = vdwg.mxu0
        %v1056 = vand.u32 2147483647, %v1038
        %vm1057 = vcmp.le.f32.partialorder %v1056, 0.7853982
        %vm1058 = vcmp.lt.s32.totalorder %v1038, 0
        %v1059 = vand.u32 %v1038, 2139095040
        %v1060 = vshrl.u32 %v1059, 23
        %v1061 = vsub.s32 %v1060, 127
        %v1062 = vand.u32 2147483647, %v1038
        %v1063 = vand.u32 %v1062, 8388607
        %v1064 = vor.u32 %v1063, 8388608
        %v1065 = vsub.s32 0, %v1064
        %v1066 = vadd.s32 %v1061, 1
        %vm1067 = vcmp.gt.s32.totalorder %v1066, 0
        %v1068 = vsel %vm1067, %v1066, 0
        %v1069 = vshrl.u32 %v1068, 5
        %v1070 = vand.u32 %v1068, 31
        %v1071 = vsub.s32 32, %v1070
        %v1072 = vshrl.u32 683565275, %v1071
        %v1073 = vshll.u32 683565275, %v1070
        %v1074 = vshrl.u32 2475754826, %v1071
        %v1075 = vor.u32 %v1073, %v1074
        %v1076 = vshll.u32 2475754826, %v1070
        %v1077 = vshrl.u32 2131351028, %v1071
        %v1078 = vor.u32 %v1076, %v1077
        %v1079 = vshll.u32 2131351028, %v1070
        %v1080 = vshrl.u32 2102212464, %v1071
        %v1081 = vor.u32 %v1079, %v1080
        %v1082 = vshll.u32 2102212464, %v1070
        %v1083 = vshrl.u32 920167782, %v1071
        %v1084 = vor.u32 %v1082, %v1083
        %v1085 = vshll.u32 920167782, %v1070
        %v1086 = vshrl.u32 1326507024, %v1071
        %v1087 = vor.u32 %v1085, %v1086
        %vm1088 = vcmp.lt.s32.totalorder %v1069, 1
        %vm1089 = vcmp.lt.s32.totalorder %v1069, 2
        %vm1090 = vcmp.lt.s32.totalorder %v1069, 3
        %vm1091 = vcmp.lt.s32.totalorder %v1069, 4
        %v1092 = vsel %vm1088, %v1072, %v1075
        %v1093 = vsel %vm1091, %v1081, 2102212464
        %v1094 = vsel %vm1090, %v1078, %v1093
        %v1095 = vsel %vm1089, %v1092, %v1094
        %v1096 = vsel %vm1088, %v1075, %v1078
        %v1097 = vsel %vm1091, %v1084, 920167782
        %v1098 = vsel %vm1090, %v1081, %v1097
        %v1099 = vsel %vm1089, %v1096, %v1098
        %v1100 = vsel %vm1088, %v1078, %v1081
        %v1101 = vsel %vm1091, %v1087, 1326507024
        %v1102 = vsel %vm1090, %v1084, %v1101
        %v1103 = vsel %vm1089, %v1100, %v1102
        %v1104 = vshll.u32 %v1064, 8
        %v1105 = vmul.u32.u64.compose %v1104, %v1103
        %v1106 = vextract.low.u32 %v1105
        %v1107 = vextract.high.u32 %v1105
        %v1108 = vmul.u32.u64.compose %v1104, %v1099
        %v1109 = vextract.low.u32 %v1108
        %v1110 = vextract.high.u32 %v1108
        %v1111 = vmul.u32 %v1104, %v1095
        %v1112 = vadd.s32 %v1107, %v1109
        %vm1113 = vc.u32 %v1107, %v1109
        %v1114 = vadd.s32 %v1110, 1
        %v1115 = vsel %vm1113, %v1114, %v1110
        %v1116 = vadd.s32 %v1111, %v1115
        %v1117 = vadd.s32 %v1116, 536870912
        %v1118 = vshrl.u32 %v1117, 30
        %v1119 = vshll.u32 %v1118, 30
        %v1120 = vsub.s32 %v1116, %v1119
        %vm1121 = vcmp.lt.s32.totalorder %v1120, 0
        %v1122 = vsub.s32 0, %v1120
        %v1123 = vsel %vm1121, %v1122, %v1120
        %v1124 = vclz %v1123
        %v1125 = vsub.s32 %v1124, 2
        %vm1126 = vcmp.gt.s32.totalorder 0, %v1125
        %v1127 = vsel %vm1126, 0, %v1125
        %v1128 = vsub.s32 32, %v1127
        %v1129 = vshll.u32 %v1120, %v1127
        %v1130 = vshrl.u32 %v1112, %v1128
        %v1131 = vor.u32 %v1129, %v1130
        %v1132 = vsub.s32 4294967266, %v1127
        %v1133 = vadd.s32 %v1132, 127
        %v1134 = vshll.u32 %v1133, 23
        %v1135 = vor.u32 4788187, %v1134
        %v1136 = vand.u32 2147483647, %v1135
        %v1138 = vcvt.s32.f32 %v1131
        %v1139 = vmul.f32 %v1138, %v1136
        %v1140 = vxor.u32 %v1139, 2147483648
        %v1141 = vsel %vm1058, %v1140, %v1139
        %v1142 = vsub.s32 4, %v1118
        %v1143 = vsel %vm1058, %v1142, %v1118
        %v1144 = vsel %vm1057, %v1038, %v1141
        %v1145 = vsel %vm1057, 0, %v1143
        %v1146 = vcosq.f32.pop %v1144
        %v1147 = vsinq.f32.pop %v1144
        %vm1148 = vweird.f32 %v1038
        %v1149 = vadd.s32 %v1145, 3
        %v1150 = vand.u32 %v1149, 3
        %vm1151 = vcmp.lt.s32.totalorder %v1150, 2
        %vm1152 = vcmp.eq.s32.totalorder %v1150, 0
        %v1153 = vxor.u32 %v1147, 2147483648
        %v1154 = vsel %vm1152, %v1146, %v1153
        %vm1155 = vcmp.eq.s32.totalorder %v1150, 2
        %v1156 = vxor.u32 %v1146, 2147483648
        %v1157 = vsel %vm1155, %v1156, %v1147
        %v1158 = vsel %vm1151, %v1154, %v1157
        %v1159 = vsel %vm1148, nan, %v1158
        %v1160 = vand.u32 2147483647, %v1043
        %vm1161 = vcmp.le.f32.partialorder %v1160, 0.7853982
        %vm1162 = vcmp.lt.s32.totalorder %v1043, 0
        %v1163 = vand.u32 %v1043, 2139095040
        %v1164 = vshrl.u32 %v1163, 23
        %v1165 = vsub.s32 %v1164, 127
        %v1166 = vand.u32 2147483647, %v1043
        %v1167 = vand.u32 %v1166, 8388607
        %v1168 = vor.u32 %v1167, 8388608
        %v1169 = vsub.s32 0, %v1168
        %v1170 = vadd.s32 %v1165, 1
        %vm1171 = vcmp.gt.s32.totalorder %v1170, 0
        %v1172 = vsel %vm1171, %v1170, 0
        %v1173 = vshrl.u32 %v1172, 5
        %v1174 = vand.u32 %v1172, 31
        %v1175 = vsub.s32 32, %v1174
        %v1176 = vshrl.u32 683565275, %v1175
        %v1177 = vshll.u32 683565275, %v1174
        %v1178 = vshrl.u32 2475754826, %v1175
        %v1179 = vor.u32 %v1177, %v1178
        %v1180 = vshll.u32 2475754826, %v1174
        %v1181 = vshrl.u32 2131351028, %v1175
        %v1182 = vor.u32 %v1180, %v1181
        %v1183 = vshll.u32 2131351028, %v1174
        %v1184 = vshrl.u32 2102212464, %v1175
        %v1185 = vor.u32 %v1183, %v1184
        %v1186 = vshll.u32 2102212464, %v1174
        %v1187 = vshrl.u32 920167782, %v1175
        %v1188 = vor.u32 %v1186, %v1187
        %v1189 = vshll.u32 920167782, %v1174
        %v1190 = vshrl.u32 1326507024, %v1175
        %v1191 = vor.u32 %v1189, %v1190
        %vm1192 = vcmp.lt.s32.totalorder %v1173, 1
        %vm1193 = vcmp.lt.s32.totalorder %v1173, 2
        %vm1194 = vcmp.lt.s32.totalorder %v1173, 3
        %vm1195 = vcmp.lt.s32.totalorder %v1173, 4
        %v1196 = vsel %vm1192, %v1176, %v1179
        %v1197 = vsel %vm1195, %v1185, 2102212464
        %v1198 = vsel %vm1194, %v1182, %v1197
        %v1199 = vsel %vm1193, %v1196, %v1198
        %v1200 = vsel %vm1192, %v1179, %v1182
        %v1201 = vsel %vm1195, %v1188, 920167782
        %v1202 = vsel %vm1194, %v1185, %v1201
        %v1203 = vsel %vm1193, %v1200, %v1202
        %v1204 = vsel %vm1192, %v1182, %v1185
        %v1205 = vsel %vm1195, %v1191, 1326507024
        %v1206 = vsel %vm1194, %v1188, %v1205
        %v1207 = vsel %vm1193, %v1204, %v1206
        %v1208 = vshll.u32 %v1168, 8
        %v1209 = vmul.u32.u64.compose %v1208, %v1207
        %v1210 = vextract.low.u32 %v1209
        %v1211 = vextract.high.u32 %v1209
        %v1212 = vmul.u32.u64.compose %v1208, %v1203
        %v1213 = vextract.low.u32 %v1212
        %v1214 = vextract.high.u32 %v1212
        %v1215 = vmul.u32 %v1208, %v1199
        %v1216 = vadd.s32 %v1211, %v1213
        %vm1217 = vc.u32 %v1211, %v1213
        %v1218 = vadd.s32 %v1214, 1
        %v1219 = vsel %vm1217, %v1218, %v1214
        %v1220 = vadd.s32 %v1215, %v1219
        %v1221 = vadd.s32 %v1220, 536870912
        %v1222 = vshrl.u32 %v1221, 30
        %v1223 = vshll.u32 %v1222, 30
        %v1224 = vsub.s32 %v1220, %v1223
        %vm1225 = vcmp.lt.s32.totalorder %v1224, 0
        %v1226 = vsub.s32 0, %v1224
        %v1227 = vsel %vm1225, %v1226, %v1224
        %v1228 = vclz %v1227
        %v1229 = vsub.s32 %v1228, 2
        %vm1230 = vcmp.gt.s32.totalorder 0, %v1229
        %v1231 = vsel %vm1230, 0, %v1229
        %v1232 = vsub.s32 32, %v1231
        %v1233 = vshll.u32 %v1224, %v1231
        %v1234 = vshrl.u32 %v1216, %v1232
        %v1235 = vor.u32 %v1233, %v1234
        %v1236 = vsub.s32 4294967266, %v1231
        %v1237 = vadd.s32 %v1236, 127
        %v1238 = vshll.u32 %v1237, 23
        %v1239 = vor.u32 4788187, %v1238
        %v1240 = vand.u32 2147483647, %v1239
        %v1242 = vcvt.s32.f32 %v1235
        %v1243 = vmul.f32 %v1242, %v1240
        %v1244 = vxor.u32 %v1243, 2147483648
        %v1245 = vsel %vm1162, %v1244, %v1243
        %v1246 = vsub.s32 4, %v1222
        %v1247 = vsel %vm1162, %v1246, %v1222
        %v1248 = vsel %vm1161, %v1043, %v1245
        %v1249 = vsel %vm1161, 0, %v1247
        %v1250 = vcosq.f32.pop %v1248
        %v1251 = vsinq.f32.pop %v1248
        %vm1252 = vweird.f32 %v1043
        %v1253 = vadd.s32 %v1249, 3
        %v1254 = vand.u32 %v1253, 3
        %vm1255 = vcmp.lt.s32.totalorder %v1254, 2
        %vm1256 = vcmp.eq.s32.totalorder %v1254, 0
        %v1257 = vxor.u32 %v1251, 2147483648
        %v1258 = vsel %vm1256, %v1250, %v1257
        %vm1259 = vcmp.eq.s32.totalorder %v1254, 2
        %v1260 = vxor.u32 %v1250, 2147483648
        %v1261 = vsel %vm1259, %v1260, %v1251
        %v1262 = vsel %vm1255, %v1258, %v1261
        %v1263 = vsel %vm1252, nan, %v1262
        %v1264 = vand.u32 2147483647, %v1048
        %vm1265 = vcmp.le.f32.partialorder %v1264, 0.7853982
        %vm1266 = vcmp.lt.s32.totalorder %v1048, 0
        %v1267 = vand.u32 %v1048, 2139095040
        %v1268 = vshrl.u32 %v1267, 23
        %v1269 = vsub.s32 %v1268, 127
        %v1270 = vand.u32 2147483647, %v1048
        %v1271 = vand.u32 %v1270, 8388607
        %v1272 = vor.u32 %v1271, 8388608
        %v1273 = vsub.s32 0, %v1272
        %v1274 = vadd.s32 %v1269, 1
        %vm1275 = vcmp.gt.s32.totalorder %v1274, 0
        %v1276 = vsel %vm1275, %v1274, 0
        %v1277 = vshrl.u32 %v1276, 5
        %v1278 = vand.u32 %v1276, 31
        %v1279 = vsub.s32 32, %v1278
        %v1280 = vshrl.u32 683565275, %v1279
        %v1281 = vshll.u32 683565275, %v1278
        %v1282 = vshrl.u32 2475754826, %v1279
        %v1283 = vor.u32 %v1281, %v1282
        %v1284 = vshll.u32 2475754826, %v1278
        %v1285 = vshrl.u32 2131351028, %v1279
        %v1286 = vor.u32 %v1284, %v1285
        %v1287 = vshll.u32 2131351028, %v1278
        %v1288 = vshrl.u32 2102212464, %v1279
        %v1289 = vor.u32 %v1287, %v1288
        %v1290 = vshll.u32 2102212464, %v1278
        %v1291 = vshrl.u32 920167782, %v1279
        %v1292 = vor.u32 %v1290, %v1291
        %v1293 = vshll.u32 920167782, %v1278
        %v1294 = vshrl.u32 1326507024, %v1279
        %v1295 = vor.u32 %v1293, %v1294
        %vm1296 = vcmp.lt.s32.totalorder %v1277, 1
        %vm1297 = vcmp.lt.s32.totalorder %v1277, 2
        %vm1298 = vcmp.lt.s32.totalorder %v1277, 3
        %vm1299 = vcmp.lt.s32.totalorder %v1277, 4
        %v1300 = vsel %vm1296, %v1280, %v1283
        %v1301 = vsel %vm1299, %v1289, 2102212464
        %v1302 = vsel %vm1298, %v1286, %v1301
        %v1303 = vsel %vm1297, %v1300, %v1302
        %v1304 = vsel %vm1296, %v1283, %v1286
        %v1305 = vsel %vm1299, %v1292, 920167782
        %v1306 = vsel %vm1298, %v1289, %v1305
        %v1307 = vsel %vm1297, %v1304, %v1306
        %v1308 = vsel %vm1296, %v1286, %v1289
        %v1309 = vsel %vm1299, %v1295, 1326507024
        %v1310 = vsel %vm1298, %v1292, %v1309
        %v1311 = vsel %vm1297, %v1308, %v1310
        %v1312 = vshll.u32 %v1272, 8
        %v1313 = vmul.u32.u64.compose %v1312, %v1311
        %v1314 = vextract.low.u32 %v1313
        %v1315 = vextract.high.u32 %v1313
        %v1316 = vmul.u32.u64.compose %v1312, %v1307
        %v1317 = vextract.low.u32 %v1316
        %v1318 = vextract.high.u32 %v1316
        %v1319 = vmul.u32 %v1312, %v1303
        %v1320 = vadd.s32 %v1315, %v1317
        %vm1321 = vc.u32 %v1315, %v1317
        %v1322 = vadd.s32 %v1318, 1
        %v1323 = vsel %vm1321, %v1322, %v1318
        %v1324 = vadd.s32 %v1319, %v1323
        %v1325 = vadd.s32 %v1324, 536870912
        %v1326 = vshrl.u32 %v1325, 30
        %v1327 = vshll.u32 %v1326, 30
        %v1328 = vsub.s32 %v1324, %v1327
        %vm1329 = vcmp.lt.s32.totalorder %v1328, 0
        %v1330 = vsub.s32 0, %v1328
        %v1331 = vsel %vm1329, %v1330, %v1328
        %v1332 = vclz %v1331
        %v1333 = vsub.s32 %v1332, 2
        %vm1334 = vcmp.gt.s32.totalorder 0, %v1333
        %v1335 = vsel %vm1334, 0, %v1333
        %v1336 = vsub.s32 32, %v1335
        %v1337 = vshll.u32 %v1328, %v1335
        %v1338 = vshrl.u32 %v1320, %v1336
        %v1339 = vor.u32 %v1337, %v1338
        %v1340 = vsub.s32 4294967266, %v1335
        %v1341 = vadd.s32 %v1340, 127
        %v1342 = vshll.u32 %v1341, 23
        %v1343 = vor.u32 4788187, %v1342
        %v1344 = vand.u32 2147483647, %v1343
        %v1346 = vcvt.s32.f32 %v1339
        %v1347 = vmul.f32 %v1346, %v1344
        %v1348 = vxor.u32 %v1347, 2147483648
        %v1349 = vsel %vm1266, %v1348, %v1347
        %v1350 = vsub.s32 4, %v1326
        %v1351 = vsel %vm1266, %v1350, %v1326
        %v1352 = vsel %vm1265, %v1048, %v1349
        %v1353 = vsel %vm1265, 0, %v1351
        %v1354 = vcosq.f32.pop %v1352
        %v1355 = vsinq.f32.pop %v1352
        %vm1356 = vweird.f32 %v1048
        %v1357 = vadd.s32 %v1353, 3
        %v1358 = vand.u32 %v1357, 3
        %vm1359 = vcmp.lt.s32.totalorder %v1358, 2
        %vm1360 = vcmp.eq.s32.totalorder %v1358, 0
        %v1361 = vxor.u32 %v1355, 2147483648
        %v1362 = vsel %vm1360, %v1354, %v1361
        %vm1363 = vcmp.eq.s32.totalorder %v1358, 2
        %v1364 = vxor.u32 %v1354, 2147483648
        %v1365 = vsel %vm1363, %v1364, %v1355
        %v1366 = vsel %vm1359, %v1362, %v1365
        %v1367 = vsel %vm1356, nan, %v1366
        %v1368 = vand.u32 2147483647, %v1053
        %vm1369 = vcmp.le.f32.partialorder %v1368, 0.7853982
        %vm1370 = vcmp.lt.s32.totalorder %v1053, 0
        %v1371 = vand.u32 %v1053, 2139095040
        %v1372 = vshrl.u32 %v1371, 23
        %v1373 = vsub.s32 %v1372, 127
        %v1374 = vand.u32 2147483647, %v1053
        %v1375 = vand.u32 %v1374, 8388607
        %v1376 = vor.u32 %v1375, 8388608
        %v1377 = vsub.s32 0, %v1376
        %v1378 = vadd.s32 %v1373, 1
        %vm1379 = vcmp.gt.s32.totalorder %v1378, 0
        %v1380 = vsel %vm1379, %v1378, 0
        %v1381 = vshrl.u32 %v1380, 5
        %v1382 = vand.u32 %v1380, 31
        %v1383 = vsub.s32 32, %v1382
        %v1384 = vshrl.u32 683565275, %v1383
        %v1385 = vshll.u32 683565275, %v1382
        %v1386 = vshrl.u32 2475754826, %v1383
        %v1387 = vor.u32 %v1385, %v1386
        %v1388 = vshll.u32 2475754826, %v1382
        %v1389 = vshrl.u32 2131351028, %v1383
        %v1390 = vor.u32 %v1388, %v1389
        %v1391 = vshll.u32 2131351028, %v1382
        %v1392 = vshrl.u32 2102212464, %v1383
        %v1393 = vor.u32 %v1391, %v1392
        %v1394 = vshll.u32 2102212464, %v1382
        %v1395 = vshrl.u32 920167782, %v1383
        %v1396 = vor.u32 %v1394, %v1395
        %v1397 = vshll.u32 920167782, %v1382
        %v1398 = vshrl.u32 1326507024, %v1383
        %v1399 = vor.u32 %v1397, %v1398
        %vm1400 = vcmp.lt.s32.totalorder %v1381, 1
        %vm1401 = vcmp.lt.s32.totalorder %v1381, 2
        %vm1402 = vcmp.lt.s32.totalorder %v1381, 3
        %vm1403 = vcmp.lt.s32.totalorder %v1381, 4
        %v1404 = vsel %vm1400, %v1384, %v1387
        %v1405 = vsel %vm1403, %v1393, 2102212464
        %v1406 = vsel %vm1402, %v1390, %v1405
        %v1407 = vsel %vm1401, %v1404, %v1406
        %v1408 = vsel %vm1400, %v1387, %v1390
        %v1409 = vsel %vm1403, %v1396, 920167782
        %v1410 = vsel %vm1402, %v1393, %v1409
        %v1411 = vsel %vm1401, %v1408, %v1410
        %v1412 = vsel %vm1400, %v1390, %v1393
        %v1413 = vsel %vm1403, %v1399, 1326507024
        %v1414 = vsel %vm1402, %v1396, %v1413
        %v1415 = vsel %vm1401, %v1412, %v1414
        %v1416 = vshll.u32 %v1376, 8
        %v1417 = vmul.u32.u64.compose %v1416, %v1415
        %v1418 = vextract.low.u32 %v1417
        %v1419 = vextract.high.u32 %v1417
        %v1420 = vmul.u32.u64.compose %v1416, %v1411
        %v1421 = vextract.low.u32 %v1420
        %v1422 = vextract.high.u32 %v1420
        %v1423 = vmul.u32 %v1416, %v1407
        %v1424 = vadd.s32 %v1419, %v1421
        %vm1425 = vc.u32 %v1419, %v1421
        %v1426 = vadd.s32 %v1422, 1
        %v1427 = vsel %vm1425, %v1426, %v1422
        %v1428 = vadd.s32 %v1423, %v1427
        %v1429 = vadd.s32 %v1428, 536870912
        %v1430 = vshrl.u32 %v1429, 30
        %v1431 = vshll.u32 %v1430, 30
        %v1432 = vsub.s32 %v1428, %v1431
        %vm1433 = vcmp.lt.s32.totalorder %v1432, 0
        %v1434 = vsub.s32 0, %v1432
        %v1435 = vsel %vm1433, %v1434, %v1432
        %v1436 = vclz %v1435
        %v1437 = vsub.s32 %v1436, 2
        %vm1438 = vcmp.gt.s32.totalorder 0, %v1437
        %v1439 = vsel %vm1438, 0, %v1437
        %v1440 = vsub.s32 32, %v1439
        %v1441 = vshll.u32 %v1432, %v1439
        %v1442 = vshrl.u32 %v1424, %v1440
        %v1443 = vor.u32 %v1441, %v1442
        %v1444 = vsub.s32 4294967266, %v1439
        %v1445 = vadd.s32 %v1444, 127
        %v1446 = vshll.u32 %v1445, 23
        %v1447 = vor.u32 4788187, %v1446
        %v1448 = vand.u32 2147483647, %v1447
        %v1450 = vcvt.s32.f32 %v1443
        %v1451 = vmul.f32 %v1450, %v1448
        %v1452 = vxor.u32 %v1451, 2147483648
        %v1453 = vsel %vm1370, %v1452, %v1451
        %v1454 = vsub.s32 4, %v1430
        %v1455 = vsel %vm1370, %v1454, %v1430
        %v1456 = vsel %vm1369, %v1053, %v1453
        %v1457 = vsel %vm1369, 0, %v1455
        %v1458 = vcosq.f32.pop %v1456
        %v1459 = vsinq.f32.pop %v1456
        %vm1460 = vweird.f32 %v1053
        %v1461 = vadd.s32 %v1457, 3
        %v1462 = vand.u32 %v1461, 3
        %vm1463 = vcmp.lt.s32.totalorder %v1462, 2
        %vm1464 = vcmp.eq.s32.totalorder %v1462, 0
        %v1465 = vxor.u32 %v1459, 2147483648
        %v1466 = vsel %vm1464, %v1458, %v1465
        %vm1467 = vcmp.eq.s32.totalorder %v1462, 2
        %v1468 = vxor.u32 %v1458, 2147483648
        %v1469 = vsel %vm1467, %v1468, %v1459
        %v1470 = vsel %vm1463, %v1466, %v1469
        %v1471 = vsel %vm1460, nan, %v1470
        %v1472 = vsel %vm433, %v383, 0.0
        %v1473 = vadd.f32 %v1159, %v1472
        %v1474 = vadd.f32 %v1263, 0.0
        %v1475 = vadd.f32 %v1367, 0.0
        %v1476 = vadd.f32 %v1471, 0.0
        %v1477 = vld [vmem:[%s5] sm:$0xff]
        %v1478 = vld [vmem:[%s5 + $0x8] sm:$0xff]
        %v1479 = vld [vmem:[%s5 + $0x10] sm:$0xff]
        %v1480 = vld [vmem:[%s5 + $0x18] sm:$0xff]
        %v1481 = vld [vmem:[%s6] sm:$0xff]
        %v1482 = vld [vmem:[%s6 + $0x8] sm:$0xff]
        %v1483 = vld [vmem:[%s6 + $0x10] sm:$0xff]
        %v1484 = vld [vmem:[%s6 + $0x18] sm:$0xff]
        %v1485 = vld [vmem:[%s7] sm:$0xff]
        %v1486 = vld [vmem:[%s7 + $0x8] sm:$0xff]
        %v1487 = vld [vmem:[%s7 + $0x10] sm:$0xff]
        %v1488 = vld [vmem:[%s7 + $0x18] sm:$0xff]
        %v1489 = vld [vmem:[%s8] sm:$0xff]
        %v1490 = vld [vmem:[%s8 + $0x8] sm:$0xff]
        %v1491 = vld [vmem:[%s8 + $0x10] sm:$0xff]
        %v1492 = vld [vmem:[%s8 + $0x18] sm:$0xff]
        %1494 = vset.pattern.permute.xlu0 0
        %1495 = vperm.xlu0 %1494, %v1481
        %v1496 = vpop.permute.xlu0 %1495
        %1499 = vset.pattern.permute.xlu0 0
        %1500 = vperm.xlu0 %1499, %v1482
        %v1501 = vpop.permute.xlu0 %1500
        %1504 = vset.pattern.permute.xlu0 0
        %1505 = vperm.xlu0 %1504, %v1483
        %v1506 = vpop.permute.xlu0 %1505
        %1509 = vset.pattern.permute.xlu0 0
        %1510 = vperm.xlu0 %1509, %v1484
        %v1511 = vpop.permute.xlu0 %1510
        %v1514 = vsel %vm958, %v1477, 0
        %v1517 = vsel %vm958, %v1478, 0
        %v1520 = vsel %vm958, %v1479, 0
        %v1523 = vsel %vm958, %v1480, 0
        %1525 = vmatprep.subr.mxu0 0.0
        %1526 = vmatpush1.msra.mxu0 %v1473
        %1527 = vmatprep.subr.mxu0 0.0
        %1528 = vmatpush1.msra.mxu0 %v1474
        %1529 = vmatprep.subr.mxu0 0.0
        %1530 = vmatpush1.msra.mxu0 %v1475
        %1531 = vmatprep.subr.mxu0 0.0
        %1532 = vmatpush1.msra.mxu0 %v1476
        %1533 = vmatprep.subr.mxu0 0.0
        %1534 = vmatpush1.msra.mxu0 0.0
        %1535 = vmatprep.subr.mxu0 0.0
        %1536 = vmatpush1.msra.mxu0 0.0
        %1537 = vmatprep.subr.mxu0 0.0
        %1538 = vmatpush1.msra.mxu0 0.0
        %1539 = vmatprep.subr.mxu0 0.0
        %1540 = vmatpush1.msra.mxu0 0.0
        %1541 = vmatprep.subr.mxu0 0.0
        %1542 = vmatpush1.msra.mxu0 0.0
        %1543 = vmatprep.subr.mxu0 0.0
        %1544 = vmatpush1.msra.mxu0 0.0
        %1545 = vmatprep.subr.mxu0 0.0
        %1546 = vmatpush1.msra.mxu0 0.0
        %1547 = vmatprep.subr.mxu0 0.0
        %1548 = vmatpush1.msra.mxu0 0.0
        %1549 = vmatprep.subr.mxu0 0.0
        %1550 = vmatpush1.msra.mxu0 0.0
        %1551 = vmatprep.subr.mxu0 0.0
        %1552 = vmatpush1.msra.mxu0 0.0
        %1553 = vmatprep.subr.mxu0 0.0
        %1554 = vmatpush1.msra.mxu0 0.0
        %1555 = vmatprep.subr.mxu0 0.0
        %1556 = vmatpush1.msra.mxu0 0.0
        %1557 = vmatprep.subr.mxu0 0.0
        %1558 = vmatpush1.msra.mxu0 0.0
        %1559 = vmatprep.subr.mxu0 0.0
        %1560 = vmatpush1.msra.mxu0 0.0
        %1561 = vmatprep.subr.mxu0 0.0
        %1562 = vmatpush1.msra.mxu0 0.0
        %1563 = vmatprep.subr.mxu0 0.0
        %1564 = vmatpush1.msra.mxu0 0.0
        %1565 = vmatprep.subr.mxu0 0.0
        %1566 = vmatpush1.msra.mxu0 0.0
        %1567 = vmatprep.subr.mxu0 0.0
        %1568 = vmatpush1.msra.mxu0 0.0
        %1569 = vmatprep.subr.mxu0 0.0
        %1570 = vmatpush1.msra.mxu0 0.0
        %1571 = vmatprep.subr.mxu0 0.0
        %1572 = vmatpush1.msra.mxu0 0.0
        %1573 = vmatprep.subr.mxu0 0.0
        %1574 = vmatpush1.msra.mxu0 0.0
        %1575 = vmatprep.subr.mxu0 0.0
        %1576 = vmatpush1.msra.mxu0 0.0
        %1577 = vmatprep.subr.mxu0 0.0
        %1578 = vmatpush1.msra.mxu0 0.0
        %1579 = vmatprep.subr.mxu0 0.0
        %1580 = vmatpush1.msra.mxu0 0.0
        %1581 = vmatprep.subr.mxu0 0.0
        %1582 = vmatpush1.msra.mxu0 0.0
        %1583 = vmatprep.subr.mxu0 0.0
        %1584 = vmatpush1.msra.mxu0 0.0
        %1585 = vmatprep.subr.mxu0 0.0
        %1586 = vmatpush1.msra.mxu0 0.0
        %1587 = vmatprep.subr.mxu0 0.0
        %1588 = vmatpush1.msra.mxu0 0.0
        %1589 = vmatprep.mubr.f32.mxu0 0.0
        %1590 = vmatmul.mubr.f32.gmra.mrb[0].mxu0 %v1514
        %v1591 = vpop.f32.mrb[0].mxu0
        %v1592 = vadd.f32 %v1496, %v1591
        %v1593 = vpop.f32.mrb[0].mxu0
        %1594 = vmatprep.mubr.f32.mxu0 0.0
        %1595 = vmatmul.mubr.f32.gmra.mrb[0].mxu0 %v1517
        %v1596 = vpop.f32.mrb[0].mxu0
        %v1597 = vadd.f32 %v1501, %v1596
        %v1598 = vpop.f32.mrb[0].mxu0
        %1599 = vmatprep.mubr.f32.mxu0 0.0
        %1600 = vmatmul.mubr.f32.gmra.mrb[0].mxu0 %v1520
        %v1601 = vpop.f32.mrb[0].mxu0
        %v1602 = vadd.f32 %v1506, %v1601
        %v1603 = vpop.f32.mrb[0].mxu0
        %1604 = vmatprep.mubr.f32.mxu0 0.0
        %1605 = vmatmul.mubr.f32.gmra.mrb[0].mxu0 %v1523
        %v1606 = vpop.f32.mrb[0].mxu0
        %v1607 = vadd.f32 %v1511, %v1606
        %v1608 = vpop.f32.mrb[0].mxu0
        %1609 = vdwg.mxu0
        %v1610 = vand.u32 2147483647, %v1592
        %vm1611 = vcmp.le.f32.partialorder %v1610, 0.7853982
        %vm1612 = vcmp.lt.s32.totalorder %v1592, 0
        %v1613 = vand.u32 %v1592, 2139095040
        %v1614 = vshrl.u32 %v1613, 23
        %v1615 = vsub.s32 %v1614, 127
        %v1616 = vand.u32 2147483647, %v1592
        %v1617 = vand.u32 %v1616, 8388607
        %v1618 = vor.u32 %v1617, 8388608
        %v1619 = vsub.s32 0, %v1618
        %v1620 = vadd.s32 %v1615, 1
        %vm1621 = vcmp.gt.s32.totalorder %v1620, 0
        %v1622 = vsel %vm1621, %v1620, 0
        %v1623 = vshrl.u32 %v1622, 5
        %v1624 = vand.u32 %v1622, 31
        %v1625 = vsub.s32 32, %v1624
        %v1626 = vshrl.u32 683565275, %v1625
        %v1627 = vshll.u32 683565275, %v1624
        %v1628 = vshrl.u32 2475754826, %v1625
        %v1629 = vor.u32 %v1627, %v1628
        %v1630 = vshll.u32 2475754826, %v1624
        %v1631 = vshrl.u32 2131351028, %v1625
        %v1632 = vor.u32 %v1630, %v1631
        %v1633 = vshll.u32 2131351028, %v1624
        %v1634 = vshrl.u32 2102212464, %v1625
        %v1635 = vor.u32 %v1633, %v1634
        %v1636 = vshll.u32 2102212464, %v1624
        %v1637 = vshrl.u32 920167782, %v1625
        %v1638 = vor.u32 %v1636, %v1637
        %v1639 = vshll.u32 920167782, %v1624
        %v1640 = vshrl.u32 1326507024, %v1625
        %v1641 = vor.u32 %v1639, %v1640
        %vm1642 = vcmp.lt.s32.totalorder %v1623, 1
        %vm1643 = vcmp.lt.s32.totalorder %v1623, 2
        %vm1644 = vcmp.lt.s32.totalorder %v1623, 3
        %vm1645 = vcmp.lt.s32.totalorder %v1623, 4
        %v1646 = vsel %vm1642, %v1626, %v1629
        %v1647 = vsel %vm1645, %v1635, 2102212464
        %v1648 = vsel %vm1644, %v1632, %v1647
        %v1649 = vsel %vm1643, %v1646, %v1648
        %v1650 = vsel %vm1642, %v1629, %v1632
        %v1651 = vsel %vm1645, %v1638, 920167782
        %v1652 = vsel %vm1644, %v1635, %v1651
        %v1653 = vsel %vm1643, %v1650, %v1652
        %v1654 = vsel %vm1642, %v1632, %v1635
        %v1655 = vsel %vm1645, %v1641, 1326507024
        %v1656 = vsel %vm1644, %v1638, %v1655
        %v1657 = vsel %vm1643, %v1654, %v1656
        %v1658 = vshll.u32 %v1618, 8
        %v1659 = vmul.u32.u64.compose %v1658, %v1657
        %v1660 = vextract.low.u32 %v1659
        %v1661 = vextract.high.u32 %v1659
        %v1662 = vmul.u32.u64.compose %v1658, %v1653
        %v1663 = vextract.low.u32 %v1662
        %v1664 = vextract.high.u32 %v1662
        %v1665 = vmul.u32 %v1658, %v1649
        %v1666 = vadd.s32 %v1661, %v1663
        %vm1667 = vc.u32 %v1661, %v1663
        %v1668 = vadd.s32 %v1664, 1
        %v1669 = vsel %vm1667, %v1668, %v1664
        %v1670 = vadd.s32 %v1665, %v1669
        %v1671 = vadd.s32 %v1670, 536870912
        %v1672 = vshrl.u32 %v1671, 30
        %v1673 = vshll.u32 %v1672, 30
        %v1674 = vsub.s32 %v1670, %v1673
        %vm1675 = vcmp.lt.s32.totalorder %v1674, 0
        %v1676 = vsub.s32 0, %v1674
        %v1677 = vsel %vm1675, %v1676, %v1674
        %v1678 = vclz %v1677
        %v1679 = vsub.s32 %v1678, 2
        %vm1680 = vcmp.gt.s32.totalorder 0, %v1679
        %v1681 = vsel %vm1680, 0, %v1679
        %v1682 = vsub.s32 32, %v1681
        %v1683 = vshll.u32 %v1674, %v1681
        %v1684 = vshrl.u32 %v1666, %v1682
        %v1685 = vor.u32 %v1683, %v1684
        %v1686 = vsub.s32 4294967266, %v1681
        %v1687 = vadd.s32 %v1686, 127
        %v1688 = vshll.u32 %v1687, 23
        %v1689 = vor.u32 4788187, %v1688
        %v1690 = vand.u32 2147483647, %v1689
        %v1692 = vcvt.s32.f32 %v1685
        %v1693 = vmul.f32 %v1692, %v1690
        %v1694 = vxor.u32 %v1693, 2147483648
        %v1695 = vsel %vm1612, %v1694, %v1693
        %v1696 = vsub.s32 4, %v1672
        %v1697 = vsel %vm1612, %v1696, %v1672
        %v1698 = vsel %vm1611, %v1592, %v1695
        %v1699 = vsel %vm1611, 0, %v1697
        %v1700 = vcosq.f32.pop %v1698
        %v1701 = vsinq.f32.pop %v1698
        %vm1702 = vweird.f32 %v1592
        %v1703 = vadd.s32 %v1699, 3
        %v1704 = vand.u32 %v1703, 3
        %vm1705 = vcmp.lt.s32.totalorder %v1704, 2
        %vm1706 = vcmp.eq.s32.totalorder %v1704, 0
        %v1707 = vxor.u32 %v1701, 2147483648
        %v1708 = vsel %vm1706, %v1700, %v1707
        %vm1709 = vcmp.eq.s32.totalorder %v1704, 2
        %v1710 = vxor.u32 %v1700, 2147483648
        %v1711 = vsel %vm1709, %v1710, %v1701
        %v1712 = vsel %vm1705, %v1708, %v1711
        %v1713 = vsel %vm1702, nan, %v1712
        %v1714 = vand.u32 2147483647, %v1597
        %vm1715 = vcmp.le.f32.partialorder %v1714, 0.7853982
        %vm1716 = vcmp.lt.s32.totalorder %v1597, 0
        %v1717 = vand.u32 %v1597, 2139095040
        %v1718 = vshrl.u32 %v1717, 23
        %v1719 = vsub.s32 %v1718, 127
        %v1720 = vand.u32 2147483647, %v1597
        %v1721 = vand.u32 %v1720, 8388607
        %v1722 = vor.u32 %v1721, 8388608
        %v1723 = vsub.s32 0, %v1722
        %v1724 = vadd.s32 %v1719, 1
        %vm1725 = vcmp.gt.s32.totalorder %v1724, 0
        %v1726 = vsel %vm1725, %v1724, 0
        %v1727 = vshrl.u32 %v1726, 5
        %v1728 = vand.u32 %v1726, 31
        %v1729 = vsub.s32 32, %v1728
        %v1730 = vshrl.u32 683565275, %v1729
        %v1731 = vshll.u32 683565275, %v1728
        %v1732 = vshrl.u32 2475754826, %v1729
        %v1733 = vor.u32 %v1731, %v1732
        %v1734 = vshll.u32 2475754826, %v1728
        %v1735 = vshrl.u32 2131351028, %v1729
        %v1736 = vor.u32 %v1734, %v1735
        %v1737 = vshll.u32 2131351028, %v1728
        %v1738 = vshrl.u32 2102212464, %v1729
        %v1739 = vor.u32 %v1737, %v1738
        %v1740 = vshll.u32 2102212464, %v1728
        %v1741 = vshrl.u32 920167782, %v1729
        %v1742 = vor.u32 %v1740, %v1741
        %v1743 = vshll.u32 920167782, %v1728
        %v1744 = vshrl.u32 1326507024, %v1729
        %v1745 = vor.u32 %v1743, %v1744
        %vm1746 = vcmp.lt.s32.totalorder %v1727, 1
        %vm1747 = vcmp.lt.s32.totalorder %v1727, 2
        %vm1748 = vcmp.lt.s32.totalorder %v1727, 3
        %vm1749 = vcmp.lt.s32.totalorder %v1727, 4
        %v1750 = vsel %vm1746, %v1730, %v1733
        %v1751 = vsel %vm1749, %v1739, 2102212464
        %v1752 = vsel %vm1748, %v1736, %v1751
        %v1753 = vsel %vm1747, %v1750, %v1752
        %v1754 = vsel %vm1746, %v1733, %v1736
        %v1755 = vsel %vm1749, %v1742, 920167782
        %v1756 = vsel %vm1748, %v1739, %v1755
        %v1757 = vsel %vm1747, %v1754, %v1756
        %v1758 = vsel %vm1746, %v1736, %v1739
        %v1759 = vsel %vm1749, %v1745, 1326507024
        %v1760 = vsel %vm1748, %v1742, %v1759
        %v1761 = vsel %vm1747, %v1758, %v1760
        %v1762 = vshll.u32 %v1722, 8
        %v1763 = vmul.u32.u64.compose %v1762, %v1761
        %v1764 = vextract.low.u32 %v1763
        %v1765 = vextract.high.u32 %v1763
        %v1766 = vmul.u32.u64.compose %v1762, %v1757
        %v1767 = vextract.low.u32 %v1766
        %v1768 = vextract.high.u32 %v1766
        %v1769 = vmul.u32 %v1762, %v1753
        %v1770 = vadd.s32 %v1765, %v1767
        %vm1771 = vc.u32 %v1765, %v1767
        %v1772 = vadd.s32 %v1768, 1
        %v1773 = vsel %vm1771, %v1772, %v1768
        %v1774 = vadd.s32 %v1769, %v1773
        %v1775 = vadd.s32 %v1774, 536870912
        %v1776 = vshrl.u32 %v1775, 30
        %v1777 = vshll.u32 %v1776, 30
        %v1778 = vsub.s32 %v1774, %v1777
        %vm1779 = vcmp.lt.s32.totalorder %v1778, 0
        %v1780 = vsub.s32 0, %v1778
        %v1781 = vsel %vm1779, %v1780, %v1778
        %v1782 = vclz %v1781
        %v1783 = vsub.s32 %v1782, 2
        %vm1784 = vcmp.gt.s32.totalorder 0, %v1783
        %v1785 = vsel %vm1784, 0, %v1783
        %v1786 = vsub.s32 32, %v1785
        %v1787 = vshll.u32 %v1778, %v1785
        %v1788 = vshrl.u32 %v1770, %v1786
        %v1789 = vor.u32 %v1787, %v1788
        %v1790 = vsub.s32 4294967266, %v1785
        %v1791 = vadd.s32 %v1790, 127
        %v1792 = vshll.u32 %v1791, 23
        %v1793 = vor.u32 4788187, %v1792
        %v1794 = vand.u32 2147483647, %v1793
        %v1796 = vcvt.s32.f32 %v1789
        %v1797 = vmul.f32 %v1796, %v1794
        %v1798 = vxor.u32 %v1797, 2147483648
        %v1799 = vsel %vm1716, %v1798, %v1797
        %v1800 = vsub.s32 4, %v1776
        %v1801 = vsel %vm1716, %v1800, %v1776
        %v1802 = vsel %vm1715, %v1597, %v1799
        %v1803 = vsel %vm1715, 0, %v1801
        %v1804 = vcosq.f32.pop %v1802
        %v1805 = vsinq.f32.pop %v1802
        %vm1806 = vweird.f32 %v1597
        %v1807 = vadd.s32 %v1803, 3
        %v1808 = vand.u32 %v1807, 3
        %vm1809 = vcmp.lt.s32.totalorder %v1808, 2
        %vm1810 = vcmp.eq.s32.totalorder %v1808, 0
        %v1811 = vxor.u32 %v1805, 2147483648
        %v1812 = vsel %vm1810, %v1804, %v1811
        %vm1813 = vcmp.eq.s32.totalorder %v1808, 2
        %v1814 = vxor.u32 %v1804, 2147483648
        %v1815 = vsel %vm1813, %v1814, %v1805
        %v1816 = vsel %vm1809, %v1812, %v1815
        %v1817 = vsel %vm1806, nan, %v1816
        %v1818 = vand.u32 2147483647, %v1602
        %vm1819 = vcmp.le.f32.partialorder %v1818, 0.7853982
        %vm1820 = vcmp.lt.s32.totalorder %v1602, 0
        %v1821 = vand.u32 %v1602, 2139095040
        %v1822 = vshrl.u32 %v1821, 23
        %v1823 = vsub.s32 %v1822, 127
        %v1824 = vand.u32 2147483647, %v1602
        %v1825 = vand.u32 %v1824, 8388607
        %v1826 = vor.u32 %v1825, 8388608
        %v1827 = vsub.s32 0, %v1826
        %v1828 = vadd.s32 %v1823, 1
        %vm1829 = vcmp.gt.s32.totalorder %v1828, 0
        %v1830 = vsel %vm1829, %v1828, 0
        %v1831 = vshrl.u32 %v1830, 5
        %v1832 = vand.u32 %v1830, 31
        %v1833 = vsub.s32 32, %v1832
        %v1834 = vshrl.u32 683565275, %v1833
        %v1835 = vshll.u32 683565275, %v1832
        %v1836 = vshrl.u32 2475754826, %v1833
        %v1837 = vor.u32 %v1835, %v1836
        %v1838 = vshll.u32 2475754826, %v1832
        %v1839 = vshrl.u32 2131351028, %v1833
        %v1840 = vor.u32 %v1838, %v1839
        %v1841 = vshll.u32 2131351028, %v1832
        %v1842 = vshrl.u32 2102212464, %v1833
        %v1843 = vor.u32 %v1841, %v1842
        %v1844 = vshll.u32 2102212464, %v1832
        %v1845 = vshrl.u32 920167782, %v1833
        %v1846 = vor.u32 %v1844, %v1845
        %v1847 = vshll.u32 920167782, %v1832
        %v1848 = vshrl.u32 1326507024, %v1833
        %v1849 = vor.u32 %v1847, %v1848
        %vm1850 = vcmp.lt.s32.totalorder %v1831, 1
        %vm1851 = vcmp.lt.s32.totalorder %v1831, 2
        %vm1852 = vcmp.lt.s32.totalorder %v1831, 3
        %vm1853 = vcmp.lt.s32.totalorder %v1831, 4
        %v1854 = vsel %vm1850, %v1834, %v1837
        %v1855 = vsel %vm1853, %v1843, 2102212464
        %v1856 = vsel %vm1852, %v1840, %v1855
        %v1857 = vsel %vm1851, %v1854, %v1856
        %v1858 = vsel %vm1850, %v1837, %v1840
        %v1859 = vsel %vm1853, %v1846, 920167782
        %v1860 = vsel %vm1852, %v1843, %v1859
        %v1861 = vsel %vm1851, %v1858, %v1860
        %v1862 = vsel %vm1850, %v1840, %v1843
        %v1863 = vsel %vm1853, %v1849, 1326507024
        %v1864 = vsel %vm1852, %v1846, %v1863
        %v1865 = vsel %vm1851, %v1862, %v1864
        %v1866 = vshll.u32 %v1826, 8
        %v1867 = vmul.u32.u64.compose %v1866, %v1865
        %v1868 = vextract.low.u32 %v1867
        %v1869 = vextract.high.u32 %v1867
        %v1870 = vmul.u32.u64.compose %v1866, %v1861
        %v1871 = vextract.low.u32 %v1870
        %v1872 = vextract.high.u32 %v1870
        %v1873 = vmul.u32 %v1866, %v1857
        %v1874 = vadd.s32 %v1869, %v1871
        %vm1875 = vc.u32 %v1869, %v1871
        %v1876 = vadd.s32 %v1872, 1
        %v1877 = vsel %vm1875, %v1876, %v1872
        %v1878 = vadd.s32 %v1873, %v1877
        %v1879 = vadd.s32 %v1878, 536870912
        %v1880 = vshrl.u32 %v1879, 30
        %v1881 = vshll.u32 %v1880, 30
        %v1882 = vsub.s32 %v1878, %v1881
        %vm1883 = vcmp.lt.s32.totalorder %v1882, 0
        %v1884 = vsub.s32 0, %v1882
        %v1885 = vsel %vm1883, %v1884, %v1882
        %v1886 = vclz %v1885
        %v1887 = vsub.s32 %v1886, 2
        %vm1888 = vcmp.gt.s32.totalorder 0, %v1887
        %v1889 = vsel %vm1888, 0, %v1887
        %v1890 = vsub.s32 32, %v1889
        %v1891 = vshll.u32 %v1882, %v1889
        %v1892 = vshrl.u32 %v1874, %v1890
        %v1893 = vor.u32 %v1891, %v1892
        %v1894 = vsub.s32 4294967266, %v1889
        %v1895 = vadd.s32 %v1894, 127
        %v1896 = vshll.u32 %v1895, 23
        %v1897 = vor.u32 4788187, %v1896
        %v1898 = vand.u32 2147483647, %v1897
        %v1900 = vcvt.s32.f32 %v1893
        %v1901 = vmul.f32 %v1900, %v1898
        %v1902 = vxor.u32 %v1901, 2147483648
        %v1903 = vsel %vm1820, %v1902, %v1901
        %v1904 = vsub.s32 4, %v1880
        %v1905 = vsel %vm1820, %v1904, %v1880
        %v1906 = vsel %vm1819, %v1602, %v1903
        %v1907 = vsel %vm1819, 0, %v1905
        %v1908 = vcosq.f32.pop %v1906
        %v1909 = vsinq.f32.pop %v1906
        %vm1910 = vweird.f32 %v1602
        %v1911 = vadd.s32 %v1907, 3
        %v1912 = vand.u32 %v1911, 3
        %vm1913 = vcmp.lt.s32.totalorder %v1912, 2
        %vm1914 = vcmp.eq.s32.totalorder %v1912, 0
        %v1915 = vxor.u32 %v1909, 2147483648
        %v1916 = vsel %vm1914, %v1908, %v1915
        %vm1917 = vcmp.eq.s32.totalorder %v1912, 2
        %v1918 = vxor.u32 %v1908, 2147483648
        %v1919 = vsel %vm1917, %v1918, %v1909
        %v1920 = vsel %vm1913, %v1916, %v1919
        %v1921 = vsel %vm1910, nan, %v1920
        %v1922 = vand.u32 2147483647, %v1607
        %vm1923 = vcmp.le.f32.partialorder %v1922, 0.7853982
        %vm1924 = vcmp.lt.s32.totalorder %v1607, 0
        %v1925 = vand.u32 %v1607, 2139095040
        %v1926 = vshrl.u32 %v1925, 23
        %v1927 = vsub.s32 %v1926, 127
        %v1928 = vand.u32 2147483647, %v1607
        %v1929 = vand.u32 %v1928, 8388607
        %v1930 = vor.u32 %v1929, 8388608
        %v1931 = vsub.s32 0, %v1930
        %v1932 = vadd.s32 %v1927, 1
        %vm1933 = vcmp.gt.s32.totalorder %v1932, 0
        %v1934 = vsel %vm1933, %v1932, 0
        %v1935 = vshrl.u32 %v1934, 5
        %v1936 = vand.u32 %v1934, 31
        %v1937 = vsub.s32 32, %v1936
        %v1938 = vshrl.u32 683565275, %v1937
        %v1939 = vshll.u32 683565275, %v1936
        %v1940 = vshrl.u32 2475754826, %v1937
        %v1941 = vor.u32 %v1939, %v1940
        %v1942 = vshll.u32 2475754826, %v1936
        %v1943 = vshrl.u32 2131351028, %v1937
        %v1944 = vor.u32 %v1942, %v1943
        %v1945 = vshll.u32 2131351028, %v1936
        %v1946 = vshrl.u32 2102212464, %v1937
        %v1947 = vor.u32 %v1945, %v1946
        %v1948 = vshll.u32 2102212464, %v1936
        %v1949 = vshrl.u32 920167782, %v1937
        %v1950 = vor.u32 %v1948, %v1949
        %v1951 = vshll.u32 920167782, %v1936
        %v1952 = vshrl.u32 1326507024, %v1937
        %v1953 = vor.u32 %v1951, %v1952
        %vm1954 = vcmp.lt.s32.totalorder %v1935, 1
        %vm1955 = vcmp.lt.s32.totalorder %v1935, 2
        %vm1956 = vcmp.lt.s32.totalorder %v1935, 3
        %vm1957 = vcmp.lt.s32.totalorder %v1935, 4
        %v1958 = vsel %vm1954, %v1938, %v1941
        %v1959 = vsel %vm1957, %v1947, 2102212464
        %v1960 = vsel %vm1956, %v1944, %v1959
        %v1961 = vsel %vm1955, %v1958, %v1960
        %v1962 = vsel %vm1954, %v1941, %v1944
        %v1963 = vsel %vm1957, %v1950, 920167782
        %v1964 = vsel %vm1956, %v1947, %v1963
        %v1965 = vsel %vm1955, %v1962, %v1964
        %v1966 = vsel %vm1954, %v1944, %v1947
        %v1967 = vsel %vm1957, %v1953, 1326507024
        %v1968 = vsel %vm1956, %v1950, %v1967
        %v1969 = vsel %vm1955, %v1966, %v1968
        %v1970 = vshll.u32 %v1930, 8
        %v1971 = vmul.u32.u64.compose %v1970, %v1969
        %v1972 = vextract.low.u32 %v1971
        %v1973 = vextract.high.u32 %v1971
        %v1974 = vmul.u32.u64.compose %v1970, %v1965
        %v1975 = vextract.low.u32 %v1974
        %v1976 = vextract.high.u32 %v1974
        %v1977 = vmul.u32 %v1970, %v1961
        %v1978 = vadd.s32 %v1973, %v1975
        %vm1979 = vc.u32 %v1973, %v1975
        %v1980 = vadd.s32 %v1976, 1
        %v1981 = vsel %vm1979, %v1980, %v1976
        %v1982 = vadd.s32 %v1977, %v1981
        %v1983 = vadd.s32 %v1982, 536870912
        %v1984 = vshrl.u32 %v1983, 30
        %v1985 = vshll.u32 %v1984, 30
        %v1986 = vsub.s32 %v1982, %v1985
        %vm1987 = vcmp.lt.s32.totalorder %v1986, 0
        %v1988 = vsub.s32 0, %v1986
        %v1989 = vsel %vm1987, %v1988, %v1986
        %v1990 = vclz %v1989
        %v1991 = vsub.s32 %v1990, 2
        %vm1992 = vcmp.gt.s32.totalorder 0, %v1991
        %v1993 = vsel %vm1992, 0, %v1991
        %v1994 = vsub.s32 32, %v1993
        %v1995 = vshll.u32 %v1986, %v1993
        %v1996 = vshrl.u32 %v1978, %v1994
        %v1997 = vor.u32 %v1995, %v1996
        %v1998 = vsub.s32 4294967266, %v1993
        %v1999 = vadd.s32 %v1998, 127
        %v2000 = vshll.u32 %v1999, 23
        %v2001 = vor.u32 4788187, %v2000
        %v2002 = vand.u32 2147483647, %v2001
        %v2004 = vcvt.s32.f32 %v1997
        %v2005 = vmul.f32 %v2004, %v2002
        %v2006 = vxor.u32 %v2005, 2147483648
        %v2007 = vsel %vm1924, %v2006, %v2005
        %v2008 = vsub.s32 4, %v1984
        %v2009 = vsel %vm1924, %v2008, %v1984
        %v2010 = vsel %vm1923, %v1607, %v2007
        %v2011 = vsel %vm1923, 0, %v2009
        %v2012 = vcosq.f32.pop %v2010
        %v2013 = vsinq.f32.pop %v2010
        %vm2014 = vweird.f32 %v1607
        %v2015 = vadd.s32 %v2011, 3
        %v2016 = vand.u32 %v2015, 3
        %vm2017 = vcmp.lt.s32.totalorder %v2016, 2
        %vm2018 = vcmp.eq.s32.totalorder %v2016, 0
        %v2019 = vxor.u32 %v2013, 2147483648
        %v2020 = vsel %vm2018, %v2012, %v2019
        %vm2021 = vcmp.eq.s32.totalorder %v2016, 2
        %v2022 = vxor.u32 %v2012, 2147483648
        %v2023 = vsel %vm2021, %v2022, %v2013
        %v2024 = vsel %vm2017, %v2020, %v2023
        %v2025 = vsel %vm2014, nan, %v2024
        %2027 = vset.pattern.permute.xlu0 0
        %2028 = vperm.xlu0 %2027, %v1489
        %v2029 = vpop.permute.xlu0 %2028
        %2032 = vset.pattern.permute.xlu0 0
        %2033 = vperm.xlu0 %2032, %v1490
        %v2034 = vpop.permute.xlu0 %2033
        %2037 = vset.pattern.permute.xlu0 0
        %2038 = vperm.xlu0 %2037, %v1491
        %v2039 = vpop.permute.xlu0 %2038
        %2042 = vset.pattern.permute.xlu0 0
        %2043 = vperm.xlu0 %2042, %v1492
        %v2044 = vpop.permute.xlu0 %2043
        %v2047 = vsel %vm958, %v1485, 0
        %v2050 = vsel %vm958, %v1486, 0
        %v2053 = vsel %vm958, %v1487, 0
        %v2056 = vsel %vm958, %v1488, 0
        %2058 = vmatprep.subr.mxu0 0.0
        %2059 = vmatpush1.msra.mxu0 %v1713
        %2060 = vmatprep.subr.mxu0 0.0
        %2061 = vmatpush1.msra.mxu0 %v1817
        %2062 = vmatprep.subr.mxu0 0.0
        %2063 = vmatpush1.msra.mxu0 %v1921
        %2064 = vmatprep.subr.mxu0 0.0
        %2065 = vmatpush1.msra.mxu0 %v2025
        %2066 = vmatprep.subr.mxu0 0.0
        %2067 = vmatpush1.msra.mxu0 0.0
        %2068 = vmatprep.subr.mxu0 0.0
        %2069 = vmatpush1.msra.mxu0 0.0
        %2070 = vmatprep.subr.mxu0 0.0
        %2071 = vmatpush1.msra.mxu0 0.0
        %2072 = vmatprep.subr.mxu0 0.0
        %2073 = vmatpush1.msra.mxu0 0.0
        %2074 = vmatprep.subr.mxu0 0.0
        %2075 = vmatpush1.msra.mxu0 0.0
        %2076 = vmatprep.subr.mxu0 0.0
        %2077 = vmatpush1.msra.mxu0 0.0
        %2078 = vmatprep.subr.mxu0 0.0
        %2079 = vmatpush1.msra.mxu0 0.0
        %2080 = vmatprep.subr.mxu0 0.0
        %2081 = vmatpush1.msra.mxu0 0.0
        %2082 = vmatprep.subr.mxu0 0.0
        %2083 = vmatpush1.msra.mxu0 0.0
        %2084 = vmatprep.subr.mxu0 0.0
        %2085 = vmatpush1.msra.mxu0 0.0
        %2086 = vmatprep.subr.mxu0 0.0
        %2087 = vmatpush1.msra.mxu0 0.0
        %2088 = vmatprep.subr.mxu0 0.0
        %2089 = vmatpush1.msra.mxu0 0.0
        %2090 = vmatprep.subr.mxu0 0.0
        %2091 = vmatpush1.msra.mxu0 0.0
        %2092 = vmatprep.subr.mxu0 0.0
        %2093 = vmatpush1.msra.mxu0 0.0
        %2094 = vmatprep.subr.mxu0 0.0
        %2095 = vmatpush1.msra.mxu0 0.0
        %2096 = vmatprep.subr.mxu0 0.0
        %2097 = vmatpush1.msra.mxu0 0.0
        %2098 = vmatprep.subr.mxu0 0.0
        %2099 = vmatpush1.msra.mxu0 0.0
        %2100 = vmatprep.subr.mxu0 0.0
        %2101 = vmatpush1.msra.mxu0 0.0
        %2102 = vmatprep.subr.mxu0 0.0
        %2103 = vmatpush1.msra.mxu0 0.0
        %2104 = vmatprep.subr.mxu0 0.0
        %2105 = vmatpush1.msra.mxu0 0.0
        %2106 = vmatprep.subr.mxu0 0.0
        %2107 = vmatpush1.msra.mxu0 0.0
        %2108 = vmatprep.subr.mxu0 0.0
        %2109 = vmatpush1.msra.mxu0 0.0
        %2110 = vmatprep.subr.mxu0 0.0
        %2111 = vmatpush1.msra.mxu0 0.0
        %2112 = vmatprep.subr.mxu0 0.0
        %2113 = vmatpush1.msra.mxu0 0.0
        %2114 = vmatprep.subr.mxu0 0.0
        %2115 = vmatpush1.msra.mxu0 0.0
        %2116 = vmatprep.subr.mxu0 0.0
        %2117 = vmatpush1.msra.mxu0 0.0
        %2118 = vmatprep.subr.mxu0 0.0
        %2119 = vmatpush1.msra.mxu0 0.0
        %2120 = vmatprep.subr.mxu0 0.0
        %2121 = vmatpush1.msra.mxu0 0.0
        %2122 = vmatprep.mubr.f32.mxu0 0.0
        %2123 = vmatmul.mubr.f32.gmra.mrb[0].mxu0 %v2047
        %v2124 = vpop.f32.mrb[0].mxu0
        %v2125 = vadd.f32 %v2029, %v2124
        %v2126 = vpop.f32.mrb[0].mxu0
        %2127 = vmatprep.mubr.f32.mxu0 0.0
        %2128 = vmatmul.mubr.f32.gmra.mrb[0].mxu0 %v2050
        %v2129 = vpop.f32.mrb[0].mxu0
        %v2130 = vadd.f32 %v2034, %v2129
        %v2131 = vpop.f32.mrb[0].mxu0
        %2132 = vmatprep.mubr.f32.mxu0 0.0
        %2133 = vmatmul.mubr.f32.gmra.mrb[0].mxu0 %v2053
        %v2134 = vpop.f32.mrb[0].mxu0
        %v2135 = vadd.f32 %v2039, %v2134
        %v2136 = vpop.f32.mrb[0].mxu0
        %2137 = vmatprep.mubr.f32.mxu0 0.0
        %2138 = vmatmul.mubr.f32.gmra.mrb[0].mxu0 %v2056
        %v2139 = vpop.f32.mrb[0].mxu0
        %v2140 = vadd.f32 %v2044, %v2139
        %v2141 = vpop.f32.mrb[0].mxu0
        %2142 = vdwg.mxu0
        %v2143 = vand.u32 2147483647, %v2125
        %vm2144 = vcmp.le.f32.partialorder %v2143, 0.7853982
        %vm2145 = vcmp.lt.s32.totalorder %v2125, 0
        %v2146 = vand.u32 %v2125, 2139095040
        %v2147 = vshrl.u32 %v2146, 23
        %v2148 = vsub.s32 %v2147, 127
        %v2149 = vand.u32 2147483647, %v2125
        %v2150 = vand.u32 %v2149, 8388607
        %v2151 = vor.u32 %v2150, 8388608
        %v2152 = vsub.s32 0, %v2151
        %v2153 = vadd.s32 %v2148, 1
        %vm2154 = vcmp.gt.s32.totalorder %v2153, 0
        %v2155 = vsel %vm2154, %v2153, 0
        %v2156 = vshrl.u32 %v2155, 5
        %v2157 = vand.u32 %v2155, 31
        %v2158 = vsub.s32 32, %v2157
        %v2159 = vshrl.u32 683565275, %v2158
        %v2160 = vshll.u32 683565275, %v2157
        %v2161 = vshrl.u32 2475754826, %v2158
        %v2162 = vor.u32 %v2160, %v2161
        %v2163 = vshll.u32 2475754826, %v2157
        %v2164 = vshrl.u32 2131351028, %v2158
        %v2165 = vor.u32 %v2163, %v2164
        %v2166 = vshll.u32 2131351028, %v2157
        %v2167 = vshrl.u32 2102212464, %v2158
        %v2168 = vor.u32 %v2166, %v2167
        %v2169 = vshll.u32 2102212464, %v2157
        %v2170 = vshrl.u32 920167782, %v2158
        %v2171 = vor.u32 %v2169, %v2170
        %v2172 = vshll.u32 920167782, %v2157
        %v2173 = vshrl.u32 1326507024, %v2158
        %v2174 = vor.u32 %v2172, %v2173
        %vm2175 = vcmp.lt.s32.totalorder %v2156, 1
        %vm2176 = vcmp.lt.s32.totalorder %v2156, 2
        %vm2177 = vcmp.lt.s32.totalorder %v2156, 3
        %vm2178 = vcmp.lt.s32.totalorder %v2156, 4
        %v2179 = vsel %vm2175, %v2159, %v2162
        %v2180 = vsel %vm2178, %v2168, 2102212464
        %v2181 = vsel %vm2177, %v2165, %v2180
        %v2182 = vsel %vm2176, %v2179, %v2181
        %v2183 = vsel %vm2175, %v2162, %v2165
        %v2184 = vsel %vm2178, %v2171, 920167782
        %v2185 = vsel %vm2177, %v2168, %v2184
        %v2186 = vsel %vm2176, %v2183, %v2185
        %v2187 = vsel %vm2175, %v2165, %v2168
        %v2188 = vsel %vm2178, %v2174, 1326507024
        %v2189 = vsel %vm2177, %v2171, %v2188
        %v2190 = vsel %vm2176, %v2187, %v2189
        %v2191 = vshll.u32 %v2151, 8
        %v2192 = vmul.u32.u64.compose %v2191, %v2190
        %v2193 = vextract.low.u32 %v2192
        %v2194 = vextract.high.u32 %v2192
        %v2195 = vmul.u32.u64.compose %v2191, %v2186
        %v2196 = vextract.low.u32 %v2195
        %v2197 = vextract.high.u32 %v2195
        %v2198 = vmul.u32 %v2191, %v2182
        %v2199 = vadd.s32 %v2194, %v2196
        %vm2200 = vc.u32 %v2194, %v2196
        %v2201 = vadd.s32 %v2197, 1
        %v2202 = vsel %vm2200, %v2201, %v2197
        %v2203 = vadd.s32 %v2198, %v2202
        %v2204 = vadd.s32 %v2203, 536870912
        %v2205 = vshrl.u32 %v2204, 30
        %v2206 = vshll.u32 %v2205, 30
        %v2207 = vsub.s32 %v2203, %v2206
        %vm2208 = vcmp.lt.s32.totalorder %v2207, 0
        %v2209 = vsub.s32 0, %v2207
        %v2210 = vsel %vm2208, %v2209, %v2207
        %v2211 = vclz %v2210
        %v2212 = vsub.s32 %v2211, 2
        %vm2213 = vcmp.gt.s32.totalorder 0, %v2212
        %v2214 = vsel %vm2213, 0, %v2212
        %v2215 = vsub.s32 32, %v2214
        %v2216 = vshll.u32 %v2207, %v2214
        %v2217 = vshrl.u32 %v2199, %v2215
        %v2218 = vor.u32 %v2216, %v2217
        %v2219 = vsub.s32 4294967266, %v2214
        %v2220 = vadd.s32 %v2219, 127
        %v2221 = vshll.u32 %v2220, 23
        %v2222 = vor.u32 4788187, %v2221
        %v2223 = vand.u32 2147483647, %v2222
        %v2225 = vcvt.s32.f32 %v2218
        %v2226 = vmul.f32 %v2225, %v2223
        %v2227 = vxor.u32 %v2226, 2147483648
        %v2228 = vsel %vm2145, %v2227, %v2226
        %v2229 = vsub.s32 4, %v2205
        %v2230 = vsel %vm2145, %v2229, %v2205
        %v2231 = vsel %vm2144, %v2125, %v2228
        %v2232 = vsel %vm2144, 0, %v2230
        %v2233 = vcosq.f32.pop %v2231
        %v2234 = vsinq.f32.pop %v2231
        %vm2235 = vweird.f32 %v2125
        %v2236 = vadd.s32 %v2232, 3
        %v2237 = vand.u32 %v2236, 3
        %vm2238 = vcmp.lt.s32.totalorder %v2237, 2
        %vm2239 = vcmp.eq.s32.totalorder %v2237, 0
        %v2240 = vxor.u32 %v2234, 2147483648
        %v2241 = vsel %vm2239, %v2233, %v2240
        %vm2242 = vcmp.eq.s32.totalorder %v2237, 2
        %v2243 = vxor.u32 %v2233, 2147483648
        %v2244 = vsel %vm2242, %v2243, %v2234
        %v2245 = vsel %vm2238, %v2241, %v2244
        %v2246 = vsel %vm2235, nan, %v2245
        %v2247 = vand.u32 2147483647, %v2130
        %vm2248 = vcmp.le.f32.partialorder %v2247, 0.7853982
        %vm2249 = vcmp.lt.s32.totalorder %v2130, 0
        %v2250 = vand.u32 %v2130, 2139095040
        %v2251 = vshrl.u32 %v2250, 23
        %v2252 = vsub.s32 %v2251, 127
        %v2253 = vand.u32 2147483647, %v2130
        %v2254 = vand.u32 %v2253, 8388607
        %v2255 = vor.u32 %v2254, 8388608
        %v2256 = vsub.s32 0, %v2255
        %v2257 = vadd.s32 %v2252, 1
        %vm2258 = vcmp.gt.s32.totalorder %v2257, 0
        %v2259 = vsel %vm2258, %v2257, 0
        %v2260 = vshrl.u32 %v2259, 5
        %v2261 = vand.u32 %v2259, 31
        %v2262 = vsub.s32 32, %v2261
        %v2263 = vshrl.u32 683565275, %v2262
        %v2264 = vshll.u32 683565275, %v2261
        %v2265 = vshrl.u32 2475754826, %v2262
        %v2266 = vor.u32 %v2264, %v2265
        %v2267 = vshll.u32 2475754826, %v2261
        %v2268 = vshrl.u32 2131351028, %v2262
        %v2269 = vor.u32 %v2267, %v2268
        %v2270 = vshll.u32 2131351028, %v2261
        %v2271 = vshrl.u32 2102212464, %v2262
        %v2272 = vor.u32 %v2270, %v2271
        %v2273 = vshll.u32 2102212464, %v2261
        %v2274 = vshrl.u32 920167782, %v2262
        %v2275 = vor.u32 %v2273, %v2274
        %v2276 = vshll.u32 920167782, %v2261
        %v2277 = vshrl.u32 1326507024, %v2262
        %v2278 = vor.u32 %v2276, %v2277
        %vm2279 = vcmp.lt.s32.totalorder %v2260, 1
        %vm2280 = vcmp.lt.s32.totalorder %v2260, 2
        %vm2281 = vcmp.lt.s32.totalorder %v2260, 3
        %vm2282 = vcmp.lt.s32.totalorder %v2260, 4
        %v2283 = vsel %vm2279, %v2263, %v2266
        %v2284 = vsel %vm2282, %v2272, 2102212464
        %v2285 = vsel %vm2281, %v2269, %v2284
        %v2286 = vsel %vm2280, %v2283, %v2285
        %v2287 = vsel %vm2279, %v2266, %v2269
        %v2288 = vsel %vm2282, %v2275, 920167782
        %v2289 = vsel %vm2281, %v2272, %v2288
        %v2290 = vsel %vm2280, %v2287, %v2289
        %v2291 = vsel %vm2279, %v2269, %v2272
        %v2292 = vsel %vm2282, %v2278, 1326507024
        %v2293 = vsel %vm2281, %v2275, %v2292
        %v2294 = vsel %vm2280, %v2291, %v2293
        %v2295 = vshll.u32 %v2255, 8
        %v2296 = vmul.u32.u64.compose %v2295, %v2294
        %v2297 = vextract.low.u32 %v2296
        %v2298 = vextract.high.u32 %v2296
        %v2299 = vmul.u32.u64.compose %v2295, %v2290
        %v2300 = vextract.low.u32 %v2299
        %v2301 = vextract.high.u32 %v2299
        %v2302 = vmul.u32 %v2295, %v2286
        %v2303 = vadd.s32 %v2298, %v2300
        %vm2304 = vc.u32 %v2298, %v2300
        %v2305 = vadd.s32 %v2301, 1
        %v2306 = vsel %vm2304, %v2305, %v2301
        %v2307 = vadd.s32 %v2302, %v2306
        %v2308 = vadd.s32 %v2307, 536870912
        %v2309 = vshrl.u32 %v2308, 30
        %v2310 = vshll.u32 %v2309, 30
        %v2311 = vsub.s32 %v2307, %v2310
        %vm2312 = vcmp.lt.s32.totalorder %v2311, 0
        %v2313 = vsub.s32 0, %v2311
        %v2314 = vsel %vm2312, %v2313, %v2311
        %v2315 = vclz %v2314
        %v2316 = vsub.s32 %v2315, 2
        %vm2317 = vcmp.gt.s32.totalorder 0, %v2316
        %v2318 = vsel %vm2317, 0, %v2316
        %v2319 = vsub.s32 32, %v2318
        %v2320 = vshll.u32 %v2311, %v2318
        %v2321 = vshrl.u32 %v2303, %v2319
        %v2322 = vor.u32 %v2320, %v2321
        %v2323 = vsub.s32 4294967266, %v2318
        %v2324 = vadd.s32 %v2323, 127
        %v2325 = vshll.u32 %v2324, 23
        %v2326 = vor.u32 4788187, %v2325
        %v2327 = vand.u32 2147483647, %v2326
        %v2329 = vcvt.s32.f32 %v2322
        %v2330 = vmul.f32 %v2329, %v2327
        %v2331 = vxor.u32 %v2330, 2147483648
        %v2332 = vsel %vm2249, %v2331, %v2330
        %v2333 = vsub.s32 4, %v2309
        %v2334 = vsel %vm2249, %v2333, %v2309
        %v2335 = vsel %vm2248, %v2130, %v2332
        %v2336 = vsel %vm2248, 0, %v2334
        %v2337 = vcosq.f32.pop %v2335
        %v2338 = vsinq.f32.pop %v2335
        %vm2339 = vweird.f32 %v2130
        %v2340 = vadd.s32 %v2336, 3
        %v2341 = vand.u32 %v2340, 3
        %vm2342 = vcmp.lt.s32.totalorder %v2341, 2
        %vm2343 = vcmp.eq.s32.totalorder %v2341, 0
        %v2344 = vxor.u32 %v2338, 2147483648
        %v2345 = vsel %vm2343, %v2337, %v2344
        %vm2346 = vcmp.eq.s32.totalorder %v2341, 2
        %v2347 = vxor.u32 %v2337, 2147483648
        %v2348 = vsel %vm2346, %v2347, %v2338
        %v2349 = vsel %vm2342, %v2345, %v2348
        %v2350 = vsel %vm2339, nan, %v2349
        %v2351 = vand.u32 2147483647, %v2135
        %vm2352 = vcmp.le.f32.partialorder %v2351, 0.7853982
        %vm2353 = vcmp.lt.s32.totalorder %v2135, 0
        %v2354 = vand.u32 %v2135, 2139095040
        %v2355 = vshrl.u32 %v2354, 23
        %v2356 = vsub.s32 %v2355, 127
        %v2357 = vand.u32 2147483647, %v2135
        %v2358 = vand.u32 %v2357, 8388607
        %v2359 = vor.u32 %v2358, 8388608
        %v2360 = vsub.s32 0, %v2359
        %v2361 = vadd.s32 %v2356, 1
        %vm2362 = vcmp.gt.s32.totalorder %v2361, 0
        %v2363 = vsel %vm2362, %v2361, 0
        %v2364 = vshrl.u32 %v2363, 5
        %v2365 = vand.u32 %v2363, 31
        %v2366 = vsub.s32 32, %v2365
        %v2367 = vshrl.u32 683565275, %v2366
        %v2368 = vshll.u32 683565275, %v2365
        %v2369 = vshrl.u32 2475754826, %v2366
        %v2370 = vor.u32 %v2368, %v2369
        %v2371 = vshll.u32 2475754826, %v2365
        %v2372 = vshrl.u32 2131351028, %v2366
        %v2373 = vor.u32 %v2371, %v2372
        %v2374 = vshll.u32 2131351028, %v2365
        %v2375 = vshrl.u32 2102212464, %v2366
        %v2376 = vor.u32 %v2374, %v2375
        %v2377 = vshll.u32 2102212464, %v2365
        %v2378 = vshrl.u32 920167782, %v2366
        %v2379 = vor.u32 %v2377, %v2378
        %v2380 = vshll.u32 920167782, %v2365
        %v2381 = vshrl.u32 1326507024, %v2366
        %v2382 = vor.u32 %v2380, %v2381
        %vm2383 = vcmp.lt.s32.totalorder %v2364, 1
        %vm2384 = vcmp.lt.s32.totalorder %v2364, 2
        %vm2385 = vcmp.lt.s32.totalorder %v2364, 3
        %vm2386 = vcmp.lt.s32.totalorder %v2364, 4
        %v2387 = vsel %vm2383, %v2367, %v2370
        %v2388 = vsel %vm2386, %v2376, 2102212464
        %v2389 = vsel %vm2385, %v2373, %v2388
        %v2390 = vsel %vm2384, %v2387, %v2389
        %v2391 = vsel %vm2383, %v2370, %v2373
        %v2392 = vsel %vm2386, %v2379, 920167782
        %v2393 = vsel %vm2385, %v2376, %v2392
        %v2394 = vsel %vm2384, %v2391, %v2393
        %v2395 = vsel %vm2383, %v2373, %v2376
        %v2396 = vsel %vm2386, %v2382, 1326507024
        %v2397 = vsel %vm2385, %v2379, %v2396
        %v2398 = vsel %vm2384, %v2395, %v2397
        %v2399 = vshll.u32 %v2359, 8
        %v2400 = vmul.u32.u64.compose %v2399, %v2398
        %v2401 = vextract.low.u32 %v2400
        %v2402 = vextract.high.u32 %v2400
        %v2403 = vmul.u32.u64.compose %v2399, %v2394
        %v2404 = vextract.low.u32 %v2403
        %v2405 = vextract.high.u32 %v2403
        %v2406 = vmul.u32 %v2399, %v2390
        %v2407 = vadd.s32 %v2402, %v2404
        %vm2408 = vc.u32 %v2402, %v2404
        %v2409 = vadd.s32 %v2405, 1
        %v2410 = vsel %vm2408, %v2409, %v2405
        %v2411 = vadd.s32 %v2406, %v2410
        %v2412 = vadd.s32 %v2411, 536870912
        %v2413 = vshrl.u32 %v2412, 30
        %v2414 = vshll.u32 %v2413, 30
        %v2415 = vsub.s32 %v2411, %v2414
        %vm2416 = vcmp.lt.s32.totalorder %v2415, 0
        %v2417 = vsub.s32 0, %v2415
        %v2418 = vsel %vm2416, %v2417, %v2415
        %v2419 = vclz %v2418
        %v2420 = vsub.s32 %v2419, 2
        %vm2421 = vcmp.gt.s32.totalorder 0, %v2420
        %v2422 = vsel %vm2421, 0, %v2420
        %v2423 = vsub.s32 32, %v2422
        %v2424 = vshll.u32 %v2415, %v2422
        %v2425 = vshrl.u32 %v2407, %v2423
        %v2426 = vor.u32 %v2424, %v2425
        %v2427 = vsub.s32 4294967266, %v2422
        %v2428 = vadd.s32 %v2427, 127
        %v2429 = vshll.u32 %v2428, 23
        %v2430 = vor.u32 4788187, %v2429
        %v2431 = vand.u32 2147483647, %v2430
        %v2433 = vcvt.s32.f32 %v2426
        %v2434 = vmul.f32 %v2433, %v2431
        %v2435 = vxor.u32 %v2434, 2147483648
        %v2436 = vsel %vm2353, %v2435, %v2434
        %v2437 = vsub.s32 4, %v2413
        %v2438 = vsel %vm2353, %v2437, %v2413
        %v2439 = vsel %vm2352, %v2135, %v2436
        %v2440 = vsel %vm2352, 0, %v2438
        %v2441 = vcosq.f32.pop %v2439
        %v2442 = vsinq.f32.pop %v2439
        %vm2443 = vweird.f32 %v2135
        %v2444 = vadd.s32 %v2440, 3
        %v2445 = vand.u32 %v2444, 3
        %vm2446 = vcmp.lt.s32.totalorder %v2445, 2
        %vm2447 = vcmp.eq.s32.totalorder %v2445, 0
        %v2448 = vxor.u32 %v2442, 2147483648
        %v2449 = vsel %vm2447, %v2441, %v2448
        %vm2450 = vcmp.eq.s32.totalorder %v2445, 2
        %v2451 = vxor.u32 %v2441, 2147483648
        %v2452 = vsel %vm2450, %v2451, %v2442
        %v2453 = vsel %vm2446, %v2449, %v2452
        %v2454 = vsel %vm2443, nan, %v2453
        %v2455 = vand.u32 2147483647, %v2140
        %vm2456 = vcmp.le.f32.partialorder %v2455, 0.7853982
        %vm2457 = vcmp.lt.s32.totalorder %v2140, 0
        %v2458 = vand.u32 %v2140, 2139095040
        %v2459 = vshrl.u32 %v2458, 23
        %v2460 = vsub.s32 %v2459, 127
        %v2461 = vand.u32 2147483647, %v2140
        %v2462 = vand.u32 %v2461, 8388607
        %v2463 = vor.u32 %v2462, 8388608
        %v2464 = vsub.s32 0, %v2463
        %v2465 = vadd.s32 %v2460, 1
        %vm2466 = vcmp.gt.s32.totalorder %v2465, 0
        %v2467 = vsel %vm2466, %v2465, 0
        %v2468 = vshrl.u32 %v2467, 5
        %v2469 = vand.u32 %v2467, 31
        %v2470 = vsub.s32 32, %v2469
        %v2471 = vshrl.u32 683565275, %v2470
        %v2472 = vshll.u32 683565275, %v2469
        %v2473 = vshrl.u32 2475754826, %v2470
        %v2474 = vor.u32 %v2472, %v2473
        %v2475 = vshll.u32 2475754826, %v2469
        %v2476 = vshrl.u32 2131351028, %v2470
        %v2477 = vor.u32 %v2475, %v2476
        %v2478 = vshll.u32 2131351028, %v2469
        %v2479 = vshrl.u32 2102212464, %v2470
        %v2480 = vor.u32 %v2478, %v2479
        %v2481 = vshll.u32 2102212464, %v2469
        %v2482 = vshrl.u32 920167782, %v2470
        %v2483 = vor.u32 %v2481, %v2482
        %v2484 = vshll.u32 920167782, %v2469
        %v2485 = vshrl.u32 1326507024, %v2470
        %v2486 = vor.u32 %v2484, %v2485
        %vm2487 = vcmp.lt.s32.totalorder %v2468, 1
        %vm2488 = vcmp.lt.s32.totalorder %v2468, 2
        %vm2489 = vcmp.lt.s32.totalorder %v2468, 3
        %vm2490 = vcmp.lt.s32.totalorder %v2468, 4
        %v2491 = vsel %vm2487, %v2471, %v2474
        %v2492 = vsel %vm2490, %v2480, 2102212464
        %v2493 = vsel %vm2489, %v2477, %v2492
        %v2494 = vsel %vm2488, %v2491, %v2493
        %v2495 = vsel %vm2487, %v2474, %v2477
        %v2496 = vsel %vm2490, %v2483, 920167782
        %v2497 = vsel %vm2489, %v2480, %v2496
        %v2498 = vsel %vm2488, %v2495, %v2497
        %v2499 = vsel %vm2487, %v2477, %v2480
        %v2500 = vsel %vm2490, %v2486, 1326507024
        %v2501 = vsel %vm2489, %v2483, %v2500
        %v2502 = vsel %vm2488, %v2499, %v2501
        %v2503 = vshll.u32 %v2463, 8
        %v2504 = vmul.u32.u64.compose %v2503, %v2502
        %v2505 = vextract.low.u32 %v2504
        %v2506 = vextract.high.u32 %v2504
        %v2507 = vmul.u32.u64.compose %v2503, %v2498
        %v2508 = vextract.low.u32 %v2507
        %v2509 = vextract.high.u32 %v2507
        %v2510 = vmul.u32 %v2503, %v2494
        %v2511 = vadd.s32 %v2506, %v2508
        %vm2512 = vc.u32 %v2506, %v2508
        %v2513 = vadd.s32 %v2509, 1
        %v2514 = vsel %vm2512, %v2513, %v2509
        %v2515 = vadd.s32 %v2510, %v2514
        %v2516 = vadd.s32 %v2515, 536870912
        %v2517 = vshrl.u32 %v2516, 30
        %v2518 = vshll.u32 %v2517, 30
        %v2519 = vsub.s32 %v2515, %v2518
        %vm2520 = vcmp.lt.s32.totalorder %v2519, 0
        %v2521 = vsub.s32 0, %v2519
        %v2522 = vsel %vm2520, %v2521, %v2519
        %v2523 = vclz %v2522
        %v2524 = vsub.s32 %v2523, 2
        %vm2525 = vcmp.gt.s32.totalorder 0, %v2524
        %v2526 = vsel %vm2525, 0, %v2524
        %v2527 = vsub.s32 32, %v2526
        %v2528 = vshll.u32 %v2519, %v2526
        %v2529 = vshrl.u32 %v2511, %v2527
        %v2530 = vor.u32 %v2528, %v2529
        %v2531 = vsub.s32 4294967266, %v2526
        %v2532 = vadd.s32 %v2531, 127
        %v2533 = vshll.u32 %v2532, 23
        %v2534 = vor.u32 4788187, %v2533
        %v2535 = vand.u32 2147483647, %v2534
        %v2537 = vcvt.s32.f32 %v2530
        %v2538 = vmul.f32 %v2537, %v2535
        %v2539 = vxor.u32 %v2538, 2147483648
        %v2540 = vsel %vm2457, %v2539, %v2538
        %v2541 = vsub.s32 4, %v2517
        %v2542 = vsel %vm2457, %v2541, %v2517
        %v2543 = vsel %vm2456, %v2140, %v2540
        %v2544 = vsel %vm2456, 0, %v2542
        %v2545 = vcosq.f32.pop %v2543
        %v2546 = vsinq.f32.pop %v2543
        %vm2547 = vweird.f32 %v2140
        %v2548 = vadd.s32 %v2544, 3
        %v2549 = vand.u32 %v2548, 3
        %vm2550 = vcmp.lt.s32.totalorder %v2549, 2
        %vm2551 = vcmp.eq.s32.totalorder %v2549, 0
        %v2552 = vxor.u32 %v2546, 2147483648
        %v2553 = vsel %vm2551, %v2545, %v2552
        %vm2554 = vcmp.eq.s32.totalorder %v2549, 2
        %v2555 = vxor.u32 %v2545, 2147483648
        %v2556 = vsel %vm2554, %v2555, %v2546
        %v2557 = vsel %vm2550, %v2553, %v2556
        %v2558 = vsel %vm2547, nan, %v2557
        %v2559 = vadd.f32 %v2246, %v1473
        %v2560 = vadd.f32 %v2350, %v1474
        %v2561 = vadd.f32 %v2454, %v1475
        %v2562 = vadd.f32 %v2558, %v1476
        %v2563 = vld [vmem:[%s9] sm:$0x1]
        %v2564 = vld [vmem:[#allocation2] sm:$0x1]
        %2566 = vset.pattern.permute.xlu0 0
        %2567 = vperm.xlu0 %2566, %v2564
        %v2568 = vpop.permute.xlu0 %2567
        %v2570 = vlaneseq
        %v2571 = vshrl.u32 %v2570, 7
        %v2572 = vsub.s32 0, %v2571
        %v2573 = vrot.slane %v2568, %v2572
        %v2575 = vsel %vm958, %v2563, 0
        %2577 = vmatprep.subr.mxu0 0.0
        %2578 = vmatpush1.msra.mxu0 %v2559
        %2579 = vmatprep.subr.mxu0 0.0
        %2580 = vmatpush1.msra.mxu0 %v2560
        %2581 = vmatprep.subr.mxu0 0.0
        %2582 = vmatpush1.msra.mxu0 %v2561
        %2583 = vmatprep.subr.mxu0 0.0
        %2584 = vmatpush1.msra.mxu0 %v2562
        %2585 = vmatprep.subr.mxu0 0.0
        %2586 = vmatpush1.msra.mxu0 0.0
        %2587 = vmatprep.subr.mxu0 0.0
        %2588 = vmatpush1.msra.mxu0 0.0
        %2589 = vmatprep.subr.mxu0 0.0
        %2590 = vmatpush1.msra.mxu0 0.0
        %2591 = vmatprep.subr.mxu0 0.0
        %2592 = vmatpush1.msra.mxu0 0.0
        %2593 = vmatprep.subr.mxu0 0.0
        %2594 = vmatpush1.msra.mxu0 0.0
        %2595 = vmatprep.subr.mxu0 0.0
        %2596 = vmatpush1.msra.mxu0 0.0
        %2597 = vmatprep.subr.mxu0 0.0
        %2598 = vmatpush1.msra.mxu0 0.0
        %2599 = vmatprep.subr.mxu0 0.0
        %2600 = vmatpush1.msra.mxu0 0.0
        %2601 = vmatprep.subr.mxu0 0.0
        %2602 = vmatpush1.msra.mxu0 0.0
        %2603 = vmatprep.subr.mxu0 0.0
        %2604 = vmatpush1.msra.mxu0 0.0
        %2605 = vmatprep.subr.mxu0 0.0
        %2606 = vmatpush1.msra.mxu0 0.0
        %2607 = vmatprep.subr.mxu0 0.0
        %2608 = vmatpush1.msra.mxu0 0.0
        %2609 = vmatprep.subr.mxu0 0.0
        %2610 = vmatpush1.msra.mxu0 0.0
        %2611 = vmatprep.subr.mxu0 0.0
        %2612 = vmatpush1.msra.mxu0 0.0
        %2613 = vmatprep.subr.mxu0 0.0
        %2614 = vmatpush1.msra.mxu0 0.0
        %2615 = vmatprep.subr.mxu0 0.0
        %2616 = vmatpush1.msra.mxu0 0.0
        %2617 = vmatprep.subr.mxu0 0.0
        %2618 = vmatpush1.msra.mxu0 0.0
        %2619 = vmatprep.subr.mxu0 0.0
        %2620 = vmatpush1.msra.mxu0 0.0
        %2621 = vmatprep.subr.mxu0 0.0
        %2622 = vmatpush1.msra.mxu0 0.0
        %2623 = vmatprep.subr.mxu0 0.0
        %2624 = vmatpush1.msra.mxu0 0.0
        %2625 = vmatprep.subr.mxu0 0.0
        %2626 = vmatpush1.msra.mxu0 0.0
        %2627 = vmatprep.subr.mxu0 0.0
        %2628 = vmatpush1.msra.mxu0 0.0
        %2629 = vmatprep.subr.mxu0 0.0
        %2630 = vmatpush1.msra.mxu0 0.0
        %2631 = vmatprep.subr.mxu0 0.0
        %2632 = vmatpush1.msra.mxu0 0.0
        %2633 = vmatprep.subr.mxu0 0.0
        %2634 = vmatpush1.msra.mxu0 0.0
        %2635 = vmatprep.subr.mxu0 0.0
        %2636 = vmatpush1.msra.mxu0 0.0
        %2637 = vmatprep.subr.mxu0 0.0
        %2638 = vmatpush1.msra.mxu0 0.0
        %2639 = vmatprep.subr.mxu0 0.0
        %2640 = vmatpush1.msra.mxu0 0.0
        %2641 = vmatprep.mubr.f32.mxu0 0.0
        %2642 = vmatmul.mubr.f32.gmra.mrb[0].mxu0 %v2575
        %v2643 = vpop.f32.mrb[0].mxu0
        %v2644 = vadd.f32 %v2573, %v2643
        %v2645 = vpop.f32.mrb[0].mxu0
        %2646 = vdwg.mxu0
        %2647 = vst [vmem:[%s378] sm:$0x1] %v2644
        %s2648 = sand.u32 %s271, 1
        %s2649 = scalar_lea.sflag [#allocation4], %s2648
        %s2650 = sand.u32 %s271, 1
        %s2651 = scalar_lea.vmem [#allocation3], %s2650
        // Predicated region
        $region65: #{net_forward.1} parent=63 // pred_check
          %p2652 = pneg %p281
        $region66: #{net_forward.1} parent=63 // pred_check_branch
          %2654 = sbr.rel (%p2652) target = $region68
        $region67: #{net_forward.1} parent=63 // pred_region
          %s2656 = ssub.s32 16, 16
          %2657 = vsyncadd %s2649, %s2656
          %s2658 = smul.addr %s27, 16
          %s2659 = scalar_lea.hbm %s11, %s2658
          %s2661 = sshll.u32 %s2651, 4
          %s2662 = int_to_ptr.vmem [resolvable:$true] %s2661
          %2664 = dma.vmem_to_hbm [thread:$0]  %s2662, 16, %s2659, %s2649
        $region68: #{net_forward.1} parent=63 // pred_fallthru
          _
      $region64: #{net_forward.1} parent=5 // pred_fallthru
        _
      %p2665 = scmp.le.s32.totalorder 2, %s22
      // Predicated region
      $region69: #{net_forward.1} parent=5 // pred_check
        %p2666 = pneg %p2665
      $region70: #{net_forward.1} parent=5 // pred_check_branch
        %2668 = sbr.rel (%p2666) target = $region72
      $region71: #{net_forward.1} parent=5 // pred_region
        %s2669 = ssub.s32 %s22, 2
        // Predicated region
        $region73: #{net_forward.1} parent=71 // pred_check
          %p2670 = pneg %p287
        $region74: #{net_forward.1} parent=71 // pred_check_branch
          %2672 = sbr.rel (%p2670) target = $region76
        $region75: #{net_forward.1} parent=71 // pred_region
          %s2673 = sand.u32 %s272, 1
          %s2674 = scalar_lea.sflag [#allocation4], %s2673
          %s2675 = sand.u32 %s272, 1
          %s2676 = scalar_lea.vmem [#allocation3], %s2675
          %2677 = dma.done %s2674, 16
        $region76: #{net_forward.1} parent=71 // pred_fallthru
          _
      $region72: #{net_forward.1} parent=5 // pred_fallthru
        _
    $region6: #{net_forward.1} parent=1 // loop_footer
      %s26 = sadd.s32 1, %s22
    $region7: #{net_forward.1} parent=1 // loop_footer_branch
      %21 = sbr.rel target = $region3
    $region8: #{net_forward.1} parent=1 // loop_exit
      _
    %2678 = vsyncpa [#allocation4], 1
    %s2679 = scalar_lea.sflag [#allocation4], 1
    %2680 = vsyncpa %s2679, 1

</llo_original>
